<compile_context>
chip_gen: v6e
topology: v6e:2x2x1
jax: 0.10.0
libtpu: 0.0.40
codegen_flags: <defaults>
</compile_context>

<pallas_src>
import itertools
import numpy as np
import jax
import jax.numpy as jnp
from jax.experimental import pallas as pl
from jax.experimental.pallas import tpu as pltpu


_LANE_BATCH = 128   # sequences per lane block (tags -> sublanes, sequences -> lanes)


def _viterbi_kernel(feats_ref, trans_ref, out_ref, fv_ref, bp_ref):
    """feats_ref: (S*T, B) with row t*T+i = feats[t, i] per lane-batched sequence.
    trans_ref: (T, T) constrained transitions, [to i, from j].
    out_ref:   (S+1, B) f32: rows 0..S-1 = decoded path (as float tag ids), row S = score.
    fv_ref:    (T, B) VMEM scratch (forward_var).
    bp_ref:    ((S-1)*T or T, B) VMEM scratch (backpointers, step-major)."""
    T = trans_ref.shape[0]
    ST, B = feats_ref.shape
    S = ST // T

    # Constrained-transition columns: col_j[i] = transitions[i, j].  Read once from the
    # ref (no transposed copy of `transitions` needed), reused by every time step.
    trans_cols = [trans_ref[:, pl.ds(j, 1)] for j in range(T)]          # each (T, 1)

    # forward_var at t = 0 is feats[0] (no START transition, per the PyTorch module).
    fv_ref[...] = feats_ref[pl.ds(0, T), :]                              # fv[i, b]

    # ---- forward recursion (max-plus), statically unrolled over time ----
    # TODO(synk): for long sequences (S >~ 32) switch this static unroll to a
    # lax.fori_loop; bp_ref already lives in VMEM so only the unroll changes.
    for t in range(1, S):
        # new_fv[i, b] = max_j (fv[j, b] + transitions[i, j]); bp[i, b] = first argmax_j.
        # Scanning j ascending with strict '>' updates == first-index argmax on ties.
        m = fv_ref[pl.ds(0, 1), :] + trans_cols[0]                       # (1,B)+(T,1)->(T,B)
        bp = jnp.zeros((T, B), jnp.float32)
        for j in range(1, T):
            cand = fv_ref[pl.ds(j, 1), :] + trans_cols[j]
            upd = cand > m
            bp = jnp.where(upd, jnp.float32(j), bp)
            m = jnp.where(upd, cand, m)
        bp_ref[pl.ds((t - 1) * T, T), :] = bp
        fv_ref[...] = m + feats_ref[pl.ds(t * T, T), :]                  # add emissions

    # ---- terminal: per-sequence path score and best last tag (first-index argmax) ----
    score = fv_ref[pl.ds(0, 1), :]                                       # (1, B)
    best = jnp.zeros((1, B), jnp.float32)
    for i in range(1, T):
        cand = fv_ref[pl.ds(i, 1), :]
        upd = cand > score
        best = jnp.where(upd, jnp.float32(i), best)
        score = jnp.where(upd, cand, score)

    # ---- backtracking: write each tag row straight into the merged output slab ----
    out_ref[pl.ds(S - 1, 1), :] = best
    for t in range(S - 1, 0, -1):
        nxt = jnp.zeros((1, B), jnp.float32)
        for i in range(T):
            row = bp_ref[pl.ds((t - 1) * T + i, 1), :]                   # bp[t-1][i, :]
            nxt = jnp.where(best == jnp.float32(i), row, nxt)
        best = nxt
        out_ref[pl.ds(t - 1, 1), :] = best
    out_ref[pl.ds(S, 1), :] = score                                      # row S = path_score


@jax.jit
def viterbi_decode_batch(feats, constrained):
    """feats: (B, S, T) f32; constrained: (T, T) f32 -> (scores (B,) f32, paths (B, S) i32)."""
    B, S, T = feats.shape
    nb = (B + _LANE_BATCH - 1) // _LANE_BATCH
    Bp = nb * _LANE_BATCH

    # Lane-pack: tags -> sublanes, sequences -> lanes (layout plumbing under the same jit).
    feats_lanes = jnp.transpose(
        jnp.pad(feats.astype(jnp.float32), ((0, Bp - B), (0, 0), (0, 0))),
        (1, 2, 0)).reshape(S * T, Bp)

    out_shape = jax.ShapeDtypeStruct((S + 1, Bp), jnp.float32)
    scratch = [pltpu.VMEM((T, _LANE_BATCH), jnp.float32),
               pltpu.VMEM((max(S - 1, 1) * T, _LANE_BATCH), jnp.float32)]

    if nb == 1:
        # Grid-less call: no 1-step pipeline prologue; whole (tiny) arrays land in VMEM.
        out = pl.pallas_call(
            _viterbi_kernel,
            out_shape=out_shape,
            scratch_shapes=scratch,
        )(feats_lanes, constrained)
    else:
        # Blocks of 128 sequences over a "parallel" grid axis (v7x: sharded across 2 TCs).
        out = pl.pallas_call(
            _viterbi_kernel,
            out_shape=out_shape,
            grid=(nb,),
            in_specs=[pl.BlockSpec((S * T, _LANE_BATCH), lambda g: (0, g)),
                      pl.BlockSpec((T, T), lambda g: (0, 0))],
            out_specs=pl.BlockSpec((S + 1, _LANE_BATCH), lambda g: (0, g)),
            scratch_shapes=scratch,
            compiler_params=pltpu.CompilerParams(dimension_semantics=("parallel",)),
        )(feats_lanes, constrained)

    # Tag ids round-trip through float32 (exact for small integer ids).
    paths = out[:S, :B].astype(jnp.int32).T                              # (B, S)
    scores = out[S, :B]                                                  # (B,)
    return scores, paths


class CRF:
    """JAX/Pallas equivalent of the PyTorch CRF module's forward (Viterbi decode)."""

    def __init__(self, label_map, transitions, config=None):
        self.label_map = label_map
        self.config = config
        self.tagset_size = len(label_map)
        self.transitions = jnp.asarray(transitions, jnp.float32)
        self.transition_mask = self._allowed_transitions()
        # Precompute constrained transitions once (was per-call in the PyTorch module).
        self.constrained = self.transitions + (1.0 - self.transition_mask) * (-10000.0)

    def _allowed_transitions(self):
        T = self.tagset_size
        mask = np.ones((T, T), np.float32)
        mask[0, 0] = 0.0
        for k1, k2 in itertools.permutations(self.label_map.keys(), 2):
            if k1 == '[PAD]' or k2 == '[PAD]':
                mask[self.label_map[k1], self.label_map[k2]] = 0.0
        return jnp.asarray(mask)

    def __call__(self, feats):
        feats = jnp.asarray(feats, jnp.float32)
        if feats.ndim == 2:   # single sequence: matches PyTorch forward(feats) semantics
            scores, paths = viterbi_decode_batch(feats[None], self.constrained)
            return scores[0], paths[0]
        return viterbi_decode_batch(feats, self.constrained)


def _reference_viterbi(feats, constrained):
    """Pure numpy replica of CRF._viterbi_decode for checking."""
    feats = np.asarray(feats)
    ct = np.asarray(constrained)
    S, _ = feats.shape
    fv = feats[0].copy()
    bps = []
    for t in range(1, S):
        ntv = fv[None, :] + ct                 # ntv[i, j] = fv[j] + constrained[i, j]
        bps.append(np.argmax(ntv, axis=1))     # first-index argmax, matches kernel
        fv = np.max(ntv, axis=1) + feats[t]
    best = int(np.argmax(fv))
    score = float(np.max(fv))
    path = [best]
    for bp in reversed(bps):
        best = int(bp[best])
        path.append(best)
    path.reverse()
    return score, np.asarray(path, np.int32)


if __name__ == "__main__":
    label_map = {'[PAD]': 0, 'O': 1, 'B-PER': 2, 'I-PER': 3,
                 'B-LOC': 4, 'I-LOC': 5, 'B-ORG': 6, 'I-ORG': 7}
    T = len(label_map)        # tagset_size = 8
    S = 8                     # sequence length
    B = 16                    # 16 sequences share one (8, 128) lane block

    key = jax.random.PRNGKey(0)
    k_feats, k_trans, k_feats2 = jax.random.split(key, 3)
    transitions = 0.1 * jax.random.normal(k_trans, (T, T), dtype=jnp.float32)
    crf = CRF(label_map, transitions)
    ref_ct = np.asarray(crf.constrained)

    # 1) lane-batched decode (single-block, grid-less path)
    feats_b = jax.random.normal(k_feats, (B, S, T), dtype=jnp.float32)
    scores, paths = jax.block_until_ready(crf(feats_b))
    for b in range(B):
        ref_score, ref_path = _reference_viterbi(feats_b[b], ref_ct)
        assert np.allclose(float(scores[b]), ref_score, rtol=1e-5, atol=1e-5), (b, scores[b], ref_score)
        assert np.array_equal(np.asarray(paths[b]), ref_path), (b, paths[b], ref_path)

    # 2) single-sequence forward (the PyTorch module's forward signature)
    score1, path1 = jax.block_until_ready(crf(feats_b[0]))
    ref_score, ref_path = _reference_viterbi(feats_b[0], ref_ct)
    assert np.allclose(float(score1), ref_score, rtol=1e-5, atol=1e-5), (score1, ref_score)
    assert np.array_equal(np.asarray(path1), ref_path), (path1, ref_path)

    # 3) multi-block batch (B > 128) -> "parallel" grid axis (both TCs on v7x)
    B2 = 160
    feats_b2 = jax.random.normal(k_feats2, (B2, S, T), dtype=jnp.float32)
    scores2, paths2 = jax.block_until_ready(crf(feats_b2))
    for b in (0, 77, B2 - 1):
        ref_score, ref_path = _reference_viterbi(feats_b2[b], ref_ct)
        assert np.allclose(float(scores2[b]), ref_score, rtol=1e-5, atol=1e-5), (b, scores2[b], ref_score)
        assert np.array_equal(np.asarray(paths2[b]), ref_path), (b, paths2[b], ref_path)

    print("KERNEL_OK")
</pallas_src>

<mosaic_0001>
module attributes {stable_mosaic.version = 11 : i64} {
  func.func @_viterbi_kernel(%arg0: memref<64x128xf32, #tpu.memory_space<vmem>>, %arg1: memref<8x8xf32, #tpu.memory_space<vmem>>, %arg2: memref<9x128xf32, #tpu.memory_space<vmem>>, %arg3: memref<8x128xf32, #tpu.memory_space<vmem>>, %arg4: memref<56x128xf32, #tpu.memory_space<vmem>>) attributes {dimension_semantics = [], scalar_prefetch = 0 : i64, scratch_operands = 2 : i64, tpu.core_type = #tpu.core_type<tc>} {
    %c0 = arith.constant 0 : index
    %c0_0 = arith.constant 0 : index
    %0 = vector.load %arg1[%c0, %c0_0] : memref<8x8xf32, #tpu.memory_space<vmem>>, vector<8x1xf32>
    %c0_1 = arith.constant 0 : index
    %c1 = arith.constant 1 : index
    %1 = vector.load %arg1[%c0_1, %c1] : memref<8x8xf32, #tpu.memory_space<vmem>>, vector<8x1xf32>
    %c0_2 = arith.constant 0 : index
    %c2 = arith.constant 2 : index
    %2 = vector.load %arg1[%c0_2, %c2] : memref<8x8xf32, #tpu.memory_space<vmem>>, vector<8x1xf32>
    %c0_3 = arith.constant 0 : index
    %c3 = arith.constant 3 : index
    %3 = vector.load %arg1[%c0_3, %c3] : memref<8x8xf32, #tpu.memory_space<vmem>>, vector<8x1xf32>
    %c0_4 = arith.constant 0 : index
    %c4 = arith.constant 4 : index
    %4 = vector.load %arg1[%c0_4, %c4] : memref<8x8xf32, #tpu.memory_space<vmem>>, vector<8x1xf32>
    %c0_5 = arith.constant 0 : index
    %c5 = arith.constant 5 : index
    %5 = vector.load %arg1[%c0_5, %c5] : memref<8x8xf32, #tpu.memory_space<vmem>>, vector<8x1xf32>
    %c0_6 = arith.constant 0 : index
    %c6 = arith.constant 6 : index
    %6 = vector.load %arg1[%c0_6, %c6] : memref<8x8xf32, #tpu.memory_space<vmem>>, vector<8x1xf32>
    %c0_7 = arith.constant 0 : index
    %c7 = arith.constant 7 : index
    %7 = vector.load %arg1[%c0_7, %c7] : memref<8x8xf32, #tpu.memory_space<vmem>>, vector<8x1xf32>
    %c0_8 = arith.constant 0 : index
    %c0_9 = arith.constant 0 : index
    %8 = vector.load %arg0[%c0_8, %c0_9] : memref<64x128xf32, #tpu.memory_space<vmem>>, vector<8x128xf32>
    %c0_10 = arith.constant 0 : index
    %c0_11 = arith.constant 0 : index
    %9 = vector.load %arg3[%c0_10, %c0_11] : memref<8x128xf32, #tpu.memory_space<vmem>>, vector<8x128xf32>
    tpu.vector_store %arg3[%c0_10, %c0_11], %8 {strides = array<i32>} : memref<8x128xf32, #tpu.memory_space<vmem>>, vector<8x128xf32>,
    %c0_12 = arith.constant 0 : index
    %c0_13 = arith.constant 0 : index
    %10 = vector.load %arg3[%c0_12, %c0_13] : memref<8x128xf32, #tpu.memory_space<vmem>>, vector<1x128xf32>
    %11 = vector.broadcast %10 : vector<1x128xf32> to vector<8x128xf32>
    %12 = vector.broadcast %0 : vector<8x1xf32> to vector<8x128xf32>
    %13 = arith.addf %11, %12 : vector<8x128xf32>
    %cst = arith.constant 0.000000e+00 : f32
    %14 = vector.broadcast %cst : f32 to vector<8x128xf32>
    %c1_14 = arith.constant 1 : index
    %c0_15 = arith.constant 0 : index
    %15 = vector.load %arg3[%c1_14, %c0_15] : memref<8x128xf32, #tpu.memory_space<vmem>>, vector<1x128xf32>
    %16 = vector.broadcast %15 : vector<1x128xf32> to vector<8x128xf32>
    %17 = vector.broadcast %1 : vector<8x1xf32> to vector<8x128xf32>
    %18 = arith.addf %16, %17 : vector<8x128xf32>
    %19 = arith.cmpf ogt, %18, %13 : vector<8x128xf32>
    %cst_16 = arith.constant 1.000000e+00 : f32
    %20 = vector.broadcast %cst_16 : f32 to vector<8x128xf32>
    %21 = arith.select %19, %20, %14 : vector<8x128xi1>, vector<8x128xf32>
    %22 = arith.select %19, %18, %13 : vector<8x128xi1>, vector<8x128xf32>
    %c2_17 = arith.constant 2 : index
    %c0_18 = arith.constant 0 : index
    %23 = vector.load %arg3[%c2_17, %c0_18] : memref<8x128xf32, #tpu.memory_space<vmem>>, vector<1x128xf32>
    %24 = vector.broadcast %23 : vector<1x128xf32> to vector<8x128xf32>
    %25 = vector.broadcast %2 : vector<8x1xf32> to vector<8x128xf32>
    %26 = arith.addf %24, %25 : vector<8x128xf32>
    %27 = arith.cmpf ogt, %26, %22 : vector<8x128xf32>
    %cst_19 = arith.constant 2.000000e+00 : f32
    %28 = vector.broadcast %cst_19 : f32 to vector<8x128xf32>
    %29 = arith.select %27, %28, %21 : vector<8x128xi1>, vector<8x128xf32>
    %30 = arith.select %27, %26, %22 : vector<8x128xi1>, vector<8x128xf32>
    %c3_20 = arith.constant 3 : index
    %c0_21 = arith.constant 0 : index
    %31 = vector.load %arg3[%c3_20, %c0_21] : memref<8x128xf32, #tpu.memory_space<vmem>>, vector<1x128xf32>
    %32 = vector.broadcast %31 : vector<1x128xf32> to vector<8x128xf32>
    %33 = vector.broadcast %3 : vector<8x1xf32> to vector<8x128xf32>
    %34 = arith.addf %32, %33 : vector<8x128xf32>
    %35 = arith.cmpf ogt, %34, %30 : vector<8x128xf32>
    %cst_22 = arith.constant 3.000000e+00 : f32
    %36 = vector.broadcast %cst_22 : f32 to vector<8x128xf32>
    %37 = arith.select %35, %36, %29 : vector<8x128xi1>, vector<8x128xf32>
    %38 = arith.select %35, %34, %30 : vector<8x128xi1>, vector<8x128xf32>
    %c4_23 = arith.constant 4 : index
    %c0_24 = arith.constant 0 : index
    %39 = vector.load %arg3[%c4_23, %c0_24] : memref<8x128xf32, #tpu.memory_space<vmem>>, vector<1x128xf32>
    %40 = vector.broadcast %39 : vector<1x128xf32> to vector<8x128xf32>
    %41 = vector.broadcast %4 : vector<8x1xf32> to vector<8x128xf32>
    %42 = arith.addf %40, %41 : vector<8x128xf32>
    %43 = arith.cmpf ogt, %42, %38 : vector<8x128xf32>
    %cst_25 = arith.constant 4.000000e+00 : f32
    %44 = vector.broadcast %cst_25 : f32 to vector<8x128xf32>
    %45 = arith.select %43, %44, %37 : vector<8x128xi1>, vector<8x128xf32>
    %46 = arith.select %43, %42, %38 : vector<8x128xi1>, vector<8x128xf32>
    %c5_26 = arith.constant 5 : index
    %c0_27 = arith.constant 0 : index
    %47 = vector.load %arg3[%c5_26, %c0_27] : memref<8x128xf32, #tpu.memory_space<vmem>>, vector<1x128xf32>
    %48 = vector.broadcast %47 : vector<1x128xf32> to vector<8x128xf32>
    %49 = vector.broadcast %5 : vector<8x1xf32> to vector<8x128xf32>
    %50 = arith.addf %48, %49 : vector<8x128xf32>
    %51 = arith.cmpf ogt, %50, %46 : vector<8x128xf32>
    %cst_28 = arith.constant 5.000000e+00 : f32
    %52 = vector.broadcast %cst_28 : f32 to vector<8x128xf32>
    %53 = arith.select %51, %52, %45 : vector<8x128xi1>, vector<8x128xf32>
    %54 = arith.select %51, %50, %46 : vector<8x128xi1>, vector<8x128xf32>
    %c6_29 = arith.constant 6 : index
    %c0_30 = arith.constant 0 : index
    %55 = vector.load %arg3[%c6_29, %c0_30] : memref<8x128xf32, #tpu.memory_space<vmem>>, vector<1x128xf32>
    %56 = vector.broadcast %55 : vector<1x128xf32> to vector<8x128xf32>
    %57 = vector.broadcast %6 : vector<8x1xf32> to vector<8x128xf32>
    %58 = arith.addf %56, %57 : vector<8x128xf32>
    %59 = arith.cmpf ogt, %58, %54 : vector<8x128xf32>
    %cst_31 = arith.constant 6.000000e+00 : f32
    %60 = vector.broadcast %cst_31 : f32 to vector<8x128xf32>
    %61 = arith.select %59, %60, %53 : vector<8x128xi1>, vector<8x128xf32>
    %62 = arith.select %59, %58, %54 : vector<8x128xi1>, vector<8x128xf32>
    %c7_32 = arith.constant 7 : index
    %c0_33 = arith.constant 0 : index
    %63 = vector.load %arg3[%c7_32, %c0_33] : memref<8x128xf32, #tpu.memory_space<vmem>>, vector<1x128xf32>
    %64 = vector.broadcast %63 : vector<1x128xf32> to vector<8x128xf32>
    %65 = vector.broadcast %7 : vector<8x1xf32> to vector<8x128xf32>
    %66 = arith.addf %64, %65 : vector<8x128xf32>
    %67 = arith.cmpf ogt, %66, %62 : vector<8x128xf32>
    %cst_34 = arith.constant 7.000000e+00 : f32
    %68 = vector.broadcast %cst_34 : f32 to vector<8x128xf32>
    %69 = arith.select %67, %68, %61 : vector<8x128xi1>, vector<8x128xf32>
    %70 = arith.select %67, %66, %62 : vector<8x128xi1>, vector<8x128xf32>
    %c0_35 = arith.constant 0 : index
    %c0_36 = arith.constant 0 : index
    %71 = vector.load %arg4[%c0_35, %c0_36] : memref<56x128xf32, #tpu.memory_space<vmem>>, vector<8x128xf32>
    tpu.vector_store %arg4[%c0_35, %c0_36], %69 {strides = array<i32>} : memref<56x128xf32, #tpu.memory_space<vmem>>, vector<8x128xf32>,
    %c8 = arith.constant 8 : index
    %c0_37 = arith.constant 0 : index
    %72 = vector.load %arg0[%c8, %c0_37] : memref<64x128xf32, #tpu.memory_space<vmem>>, vector<8x128xf32>
    %73 = arith.addf %70, %72 : vector<8x128xf32>
    %c0_38 = arith.constant 0 : index
    %c0_39 = arith.constant 0 : index
    %74 = vector.load %arg3[%c0_38, %c0_39] : memref<8x128xf32, #tpu.memory_space<vmem>>, vector<8x128xf32>
    tpu.vector_store %arg3[%c0_38, %c0_39], %73 {strides = array<i32>} : memref<8x128xf32, #tpu.memory_space<vmem>>, vector<8x128xf32>,
    %c0_40 = arith.constant 0 : index
    %c0_41 = arith.constant 0 : index
    %75 = vector.load %arg3[%c0_40, %c0_41] : memref<8x128xf32, #tpu.memory_space<vmem>>, vector<1x128xf32>
    %76 = vector.broadcast %75 : vector<1x128xf32> to vector<8x128xf32>
    %77 = vector.broadcast %0 : vector<8x1xf32> to vector<8x128xf32>
    %78 = arith.addf %76, %77 : vector<8x128xf32>
    %cst_42 = arith.constant 0.000000e+00 : f32
    %79 = vector.broadcast %cst_42 : f32 to vector<8x128xf32>
    %c1_43 = arith.constant 1 : index
    %c0_44 = arith.constant 0 : index
    %80 = vector.load %arg3[%c1_43, %c0_44] : memref<8x128xf32, #tpu.memory_space<vmem>>, vector<1x128xf32>
    %81 = vector.broadcast %80 : vector<1x128xf32> to vector<8x128xf32>
    %82 = vector.broadcast %1 : vector<8x1xf32> to vector<8x128xf32>
    %83 = arith.addf %81, %82 : vector<8x128xf32>
    %84 = arith.cmpf ogt, %83, %78 : vector<8x128xf32>
    %cst_45 = arith.constant 1.000000e+00 : f32
    %85 = vector.broadcast %cst_45 : f32 to vector<8x128xf32>
    %86 = arith.select %84, %85, %79 : vector<8x128xi1>, vector<8x128xf32>
    %87 = arith.select %84, %83, %78 : vector<8x128xi1>, vector<8x128xf32>
    %c2_46 = arith.constant 2 : index
    %c0_47 = arith.constant 0 : index
    %88 = vector.load %arg3[%c2_46, %c0_47] : memref<8x128xf32, #tpu.memory_space<vmem>>, vector<1x128xf32>
    %89 = vector.broadcast %88 : vector<1x128xf32> to vector<8x128xf32>
    %90 = vector.broadcast %2 : vector<8x1xf32> to vector<8x128xf32>
    %91 = arith.addf %89, %90 : vector<8x128xf32>
    %92 = arith.cmpf ogt, %91, %87 : vector<8x128xf32>
    %cst_48 = arith.constant 2.000000e+00 : f32
    %93 = vector.broadcast %cst_48 : f32 to vector<8x128xf32>
    %94 = arith.select %92, %93, %86 : vector<8x128xi1>, vector<8x128xf32>
    %95 = arith.select %92, %91, %87 : vector<8x128xi1>, vector<8x128xf32>
    %c3_49 = arith.constant 3 : index
    %c0_50 = arith.constant 0 : index
    %96 = vector.load %arg3[%c3_49, %c0_50] : memref<8x128xf32, #tpu.memory_space<vmem>>, vector<1x128xf32>
    %97 = vector.broadcast %96 : vector<1x128xf32> to vector<8x128xf32>
    %98 = vector.broadcast %3 : vector<8x1xf32> to vector<8x128xf32>
    %99 = arith.addf %97, %98 : vector<8x128xf32>
    %100 = arith.cmpf ogt, %99, %95 : vector<8x128xf32>
    %cst_51 = arith.constant 3.000000e+00 : f32
    %101 = vector.broadcast %cst_51 : f32 to vector<8x128xf32>
    %102 = arith.select %100, %101, %94 : vector<8x128xi1>, vector<8x128xf32>
    %103 = arith.select %100, %99, %95 : vector<8x128xi1>, vector<8x128xf32>
    %c4_52 = arith.constant 4 : index
    %c0_53 = arith.constant 0 : index
    %104 = vector.load %arg3[%c4_52, %c0_53] : memref<8x128xf32, #tpu.memory_space<vmem>>, vector<1x128xf32>
    %105 = vector.broadcast %104 : vector<1x128xf32> to vector<8x128xf32>
    %106 = vector.broadcast %4 : vector<8x1xf32> to vector<8x128xf32>
    %107 = arith.addf %105, %106 : vector<8x128xf32>
    %108 = arith.cmpf ogt, %107, %103 : vector<8x128xf32>
    %cst_54 = arith.constant 4.000000e+00 : f32
    %109 = vector.broadcast %cst_54 : f32 to vector<8x128xf32>
    %110 = arith.select %108, %109, %102 : vector<8x128xi1>, vector<8x128xf32>
    %111 = arith.select %108, %107, %103 : vector<8x128xi1>, vector<8x128xf32>
    %c5_55 = arith.constant 5 : index
    %c0_56 = arith.constant 0 : index
    %112 = vector.load %arg3[%c5_55, %c0_56] : memref<8x128xf32, #tpu.memory_space<vmem>>, vector<1x128xf32>
    %113 = vector.broadcast %112 : vector<1x128xf32> to vector<8x128xf32>
    %114 = vector.broadcast %5 : vector<8x1xf32> to vector<8x128xf32>
    %115 = arith.addf %113, %114 : vector<8x128xf32>
    %116 = arith.cmpf ogt, %115, %111 : vector<8x128xf32>
    %cst_57 = arith.constant 5.000000e+00 : f32
    %117 = vector.broadcast %cst_57 : f32 to vector<8x128xf32>
    %118 = arith.select %116, %117, %110 : vector<8x128xi1>, vector<8x128xf32>
    %119 = arith.select %116, %115, %111 : vector<8x128xi1>, vector<8x128xf32>
    %c6_58 = arith.constant 6 : index
    %c0_59 = arith.constant 0 : index
    %120 = vector.load %arg3[%c6_58, %c0_59] : memref<8x128xf32, #tpu.memory_space<vmem>>, vector<1x128xf32>
    %121 = vector.broadcast %120 : vector<1x128xf32> to vector<8x128xf32>
    %122 = vector.broadcast %6 : vector<8x1xf32> to vector<8x128xf32>
    %123 = arith.addf %121, %122 : vector<8x128xf32>
    %124 = arith.cmpf ogt, %123, %119 : vector<8x128xf32>
    %cst_60 = arith.constant 6.000000e+00 : f32
    %125 = vector.broadcast %cst_60 : f32 to vector<8x128xf32>
    %126 = arith.select %124, %125, %118 : vector<8x128xi1>, vector<8x128xf32>
    %127 = arith.select %124, %123, %119 : vector<8x128xi1>, vector<8x128xf32>
    %c7_61 = arith.constant 7 : index
    %c0_62 = arith.constant 0 : index
    %128 = vector.load %arg3[%c7_61, %c0_62] : memref<8x128xf32, #tpu.memory_space<vmem>>, vector<1x128xf32>
    %129 = vector.broadcast %128 : vector<1x128xf32> to vector<8x128xf32>
    %130 = vector.broadcast %7 : vector<8x1xf32> to vector<8x128xf32>
    %131 = arith.addf %129, %130 : vector<8x128xf32>
    %132 = arith.cmpf ogt, %131, %127 : vector<8x128xf32>
    %cst_63 = arith.constant 7.000000e+00 : f32
    %133 = vector.broadcast %cst_63 : f32 to vector<8x128xf32>
    %134 = arith.select %132, %133, %126 : vector<8x128xi1>, vector<8x128xf32>
    %135 = arith.select %132, %131, %127 : vector<8x128xi1>, vector<8x128xf32>
    %c8_64 = arith.constant 8 : index
    %c0_65 = arith.constant 0 : index
    %136 = vector.load %arg4[%c8_64, %c0_65] : memref<56x128xf32, #tpu.memory_space<vmem>>, vector<8x128xf32>
    tpu.vector_store %arg4[%c8_64, %c0_65], %134 {strides = array<i32>} : memref<56x128xf32, #tpu.memory_space<vmem>>, vector<8x128xf32>,
    %c16 = arith.constant 16 : index
    %c0_66 = arith.constant 0 : index
    %137 = vector.load %arg0[%c16, %c0_66] : memref<64x128xf32, #tpu.memory_space<vmem>>, vector<8x128xf32>
    %138 = arith.addf %135, %137 : vector<8x128xf32>
    %c0_67 = arith.constant 0 : index
    %c0_68 = arith.constant 0 : index
    %139 = vector.load %arg3[%c0_67, %c0_68] : memref<8x128xf32, #tpu.memory_space<vmem>>, vector<8x128xf32>
    tpu.vector_store %arg3[%c0_67, %c0_68], %138 {strides = array<i32>} : memref<8x128xf32, #tpu.memory_space<vmem>>, vector<8x128xf32>,
    %c0_69 = arith.constant 0 : index
    %c0_70 = arith.constant 0 : index
    %140 = vector.load %arg3[%c0_69, %c0_70] : memref<8x128xf32, #tpu.memory_space<vmem>>, vector<1x128xf32>
    %141 = vector.broadcast %140 : vector<1x128xf32> to vector<8x128xf32>
    %142 = vector.broadcast %0 : vector<8x1xf32> to vector<8x128xf32>
    %143 = arith.addf %141, %142 : vector<8x128xf32>
    %cst_71 = arith.constant 0.000000e+00 : f32
    %144 = vector.broadcast %cst_71 : f32 to vector<8x128xf32>
    %c1_72 = arith.constant 1 : index
    %c0_73 = arith.constant 0 : index
    %145 = vector.load %arg3[%c1_72, %c0_73] : memref<8x128xf32, #tpu.memory_space<vmem>>, vector<1x128xf32>
    %146 = vector.broadcast %145 : vector<1x128xf32> to vector<8x128xf32>
    %147 = vector.broadcast %1 : vector<8x1xf32> to vector<8x128xf32>
    %148 = arith.addf %146, %147 : vector<8x128xf32>
    %149 = arith.cmpf ogt, %148, %143 : vector<8x128xf32>
    %cst_74 = arith.constant 1.000000e+00 : f32
    %150 = vector.broadcast %cst_74 : f32 to vector<8x128xf32>
    %151 = arith.select %149, %150, %144 : vector<8x128xi1>, vector<8x128xf32>
    %152 = arith.select %149, %148, %143 : vector<8x128xi1>, vector<8x128xf32>
    %c2_75 = arith.constant 2 : index
    %c0_76 = arith.constant 0 : index
    %153 = vector.load %arg3[%c2_75, %c0_76] : memref<8x128xf32, #tpu.memory_space<vmem>>, vector<1x128xf32>
    %154 = vector.broadcast %153 : vector<1x128xf32> to vector<8x128xf32>
    %155 = vector.broadcast %2 : vector<8x1xf32> to vector<8x128xf32>
    %156 = arith.addf %154, %155 : vector<8x128xf32>
    %157 = arith.cmpf ogt, %156, %152 : vector<8x128xf32>
    %cst_77 = arith.constant 2.000000e+00 : f32
    %158 = vector.broadcast %cst_77 : f32 to vector<8x128xf32>
    %159 = arith.select %157, %158, %151 : vector<8x128xi1>, vector<8x128xf32>
    %160 = arith.select %157, %156, %152 : vector<8x128xi1>, vector<8x128xf32>
    %c3_78 = arith.constant 3 : index
    %c0_79 = arith.constant 0 : index
    %161 = vector.load %arg3[%c3_78, %c0_79] : memref<8x128xf32, #tpu.memory_space<vmem>>, vector<1x128xf32>
    %162 = vector.broadcast %161 : vector<1x128xf32> to vector<8x128xf32>
    %163 = vector.broadcast %3 : vector<8x1xf32> to vector<8x128xf32>
    %164 = arith.addf %162, %163 : vector<8x128xf32>
    %165 = arith.cmpf ogt, %164, %160 : vector<8x128xf32>
    %cst_80 = arith.constant 3.000000e+00 : f32
    %166 = vector.broadcast %cst_80 : f32 to vector<8x128xf32>
    %167 = arith.select %165, %166, %159 : vector<8x128xi1>, vector<8x128xf32>
    %168 = arith.select %165, %164, %160 : vector<8x128xi1>, vector<8x128xf32>
    %c4_81 = arith.constant 4 : index
    %c0_82 = arith.constant 0 : index
    %169 = vector.load %arg3[%c4_81, %c0_82] : memref<8x128xf32, #tpu.memory_space<vmem>>, vector<1x128xf32>
    %170 = vector.broadcast %169 : vector<1x128xf32> to vector<8x128xf32>
    %171 = vector.broadcast %4 : vector<8x1xf32> to vector<8x128xf32>
    %172 = arith.addf %170, %171 : vector<8x128xf32>
    %173 = arith.cmpf ogt, %172, %168 : vector<8x128xf32>
    %cst_83 = arith.constant 4.000000e+00 : f32
    %174 = vector.broadcast %cst_83 : f32 to vector<8x128xf32>
    %175 = arith.select %173, %174, %167 : vector<8x128xi1>, vector<8x128xf32>
    %176 = arith.select %173, %172, %168 : vector<8x128xi1>, vector<8x128xf32>
    %c5_84 = arith.constant 5 : index
    %c0_85 = arith.constant 0 : index
    %177 = vector.load %arg3[%c5_84, %c0_85] : memref<8x128xf32, #tpu.memory_space<vmem>>, vector<1x128xf32>
    %178 = vector.broadcast %177 : vector<1x128xf32> to vector<8x128xf32>
    %179 = vector.broadcast %5 : vector<8x1xf32> to vector<8x128xf32>
    %180 = arith.addf %178, %179 : vector<8x128xf32>
    %181 = arith.cmpf ogt, %180, %176 : vector<8x128xf32>
    %cst_86 = arith.constant 5.000000e+00 : f32
    %182 = vector.broadcast %cst_86 : f32 to vector<8x128xf32>
    %183 = arith.select %181, %182, %175 : vector<8x128xi1>, vector<8x128xf32>
    %184 = arith.select %181, %180, %176 : vector<8x128xi1>, vector<8x128xf32>
    %c6_87 = arith.constant 6 : index
    %c0_88 = arith.constant 0 : index
    %185 = vector.load %arg3[%c6_87, %c0_88] : memref<8x128xf32, #tpu.memory_space<vmem>>, vector<1x128xf32>
    %186 = vector.broadcast %185 : vector<1x128xf32> to vector<8x128xf32>
    %187 = vector.broadcast %6 : vector<8x1xf32> to vector<8x128xf32>
    %188 = arith.addf %186, %187 : vector<8x128xf32>
    %189 = arith.cmpf ogt, %188, %184 : vector<8x128xf32>
    %cst_89 = arith.constant 6.000000e+00 : f32
    %190 = vector.broadcast %cst_89 : f32 to vector<8x128xf32>
    %191 = arith.select %189, %190, %183 : vector<8x128xi1>, vector<8x128xf32>
    %192 = arith.select %189, %188, %184 : vector<8x128xi1>, vector<8x128xf32>
    %c7_90 = arith.constant 7 : index
    %c0_91 = arith.constant 0 : index
    %193 = vector.load %arg3[%c7_90, %c0_91] : memref<8x128xf32, #tpu.memory_space<vmem>>, vector<1x128xf32>
    %194 = vector.broadcast %193 : vector<1x128xf32> to vector<8x128xf32>
    %195 = vector.broadcast %7 : vector<8x1xf32> to vector<8x128xf32>
    %196 = arith.addf %194, %195 : vector<8x128xf32>
    %197 = arith.cmpf ogt, %196, %192 : vector<8x128xf32>
    %cst_92 = arith.constant 7.000000e+00 : f32
    %198 = vector.broadcast %cst_92 : f32 to vector<8x128xf32>
    %199 = arith.select %197, %198, %191 : vector<8x128xi1>, vector<8x128xf32>
    %200 = arith.select %197, %196, %192 : vector<8x128xi1>, vector<8x128xf32>
    %c16_93 = arith.constant 16 : index
    %c0_94 = arith.constant 0 : index
    %201 = vector.load %arg4[%c16_93, %c0_94] : memref<56x128xf32, #tpu.memory_space<vmem>>, vector<8x128xf32>
    tpu.vector_store %arg4[%c16_93, %c0_94], %199 {strides = array<i32>} : memref<56x128xf32, #tpu.memory_space<vmem>>, vector<8x128xf32>,
    %c24 = arith.constant 24 : index
    %c0_95 = arith.constant 0 : index
    %202 = vector.load %arg0[%c24, %c0_95] : memref<64x128xf32, #tpu.memory_space<vmem>>, vector<8x128xf32>
    %203 = arith.addf %200, %202 : vector<8x128xf32>
    %c0_96 = arith.constant 0 : index
    %c0_97 = arith.constant 0 : index
    %204 = vector.load %arg3[%c0_96, %c0_97] : memref<8x128xf32, #tpu.memory_space<vmem>>, vector<8x128xf32>
    tpu.vector_store %arg3[%c0_96, %c0_97], %203 {strides = array<i32>} : memref<8x128xf32, #tpu.memory_space<vmem>>, vector<8x128xf32>,
    %c0_98 = arith.constant 0 : index
    %c0_99 = arith.constant 0 : index
    %205 = vector.load %arg3[%c0_98, %c0_99] : memref<8x128xf32, #tpu.memory_space<vmem>>, vector<1x128xf32>
    %206 = vector.broadcast %205 : vector<1x128xf32> to vector<8x128xf32>
    %207 = vector.broadcast %0 : vector<8x1xf32> to vector<8x128xf32>
    %208 = arith.addf %206, %207 : vector<8x128xf32>
    %cst_100 = arith.constant 0.000000e+00 : f32
    %209 = vector.broadcast %cst_100 : f32 to vector<8x128xf32>
    %c1_101 = arith.constant 1 : index
    %c0_102 = arith.constant 0 : index
    %210 = vector.load %arg3[%c1_101, %c0_102] : memref<8x128xf32, #tpu.memory_space<vmem>>, vector<1x128xf32>
    %211 = vector.broadcast %210 : vector<1x128xf32> to vector<8x128xf32>
    %212 = vector.broadcast %1 : vector<8x1xf32> to vector<8x128xf32>
    %213 = arith.addf %211, %212 : vector<8x128xf32>
    %214 = arith.cmpf ogt, %213, %208 : vector<8x128xf32>
    %cst_103 = arith.constant 1.000000e+00 : f32
    %215 = vector.broadcast %cst_103 : f32 to vector<8x128xf32>
    %216 = arith.select %214, %215, %209 : vector<8x128xi1>, vector<8x128xf32>
    %217 = arith.select %214, %213, %208 : vector<8x128xi1>, vector<8x128xf32>
    %c2_104 = arith.constant 2 : index
    %c0_105 = arith.constant 0 : index
    %218 = vector.load %arg3[%c2_104, %c0_105] : memref<8x128xf32, #tpu.memory_space<vmem>>, vector<1x128xf32>
    %219 = vector.broadcast %218 : vector<1x128xf32> to vector<8x128xf32>
    %220 = vector.broadcast %2 : vector<8x1xf32> to vector<8x128xf32>
    %221 = arith.addf %219, %220 : vector<8x128xf32>
    %222 = arith.cmpf ogt, %221, %217 : vector<8x128xf32>
    %cst_106 = arith.constant 2.000000e+00 : f32
    %223 = vector.broadcast %cst_106 : f32 to vector<8x128xf32>
    %224 = arith.select %222, %223, %216 : vector<8x128xi1>, vector<8x128xf32>
    %225 = arith.select %222, %221, %217 : vector<8x128xi1>, vector<8x128xf32>
    %c3_107 = arith.constant 3 : index
    %c0_108 = arith.constant 0 : index
    %226 = vector.load %arg3[%c3_107, %c0_108] : memref<8x128xf32, #tpu.memory_space<vmem>>, vector<1x128xf32>
    %227 = vector.broadcast %226 : vector<1x128xf32> to vector<8x128xf32>
    %228 = vector.broadcast %3 : vector<8x1xf32> to vector<8x128xf32>
    %229 = arith.addf %227, %228 : vector<8x128xf32>
    %230 = arith.cmpf ogt, %229, %225 : vector<8x128xf32>
    %cst_109 = arith.constant 3.000000e+00 : f32
    %231 = vector.broadcast %cst_109 : f32 to vector<8x128xf32>
    %232 = arith.select %230, %231, %224 : vector<8x128xi1>, vector<8x128xf32>
    %233 = arith.select %230, %229, %225 : vector<8x128xi1>, vector<8x128xf32>
    %c4_110 = arith.constant 4 : index
    %c0_111 = arith.constant 0 : index
    %234 = vector.load %arg3[%c4_110, %c0_111] : memref<8x128xf32, #tpu.memory_space<vmem>>, vector<1x128xf32>
    %235 = vector.broadcast %234 : vector<1x128xf32> to vector<8x128xf32>
    %236 = vector.broadcast %4 : vector<8x1xf32> to vector<8x128xf32>
    %237 = arith.addf %235, %236 : vector<8x128xf32>
    %238 = arith.cmpf ogt, %237, %233 : vector<8x128xf32>
    %cst_112 = arith.constant 4.000000e+00 : f32
    %239 = vector.broadcast %cst_112 : f32 to vector<8x128xf32>
    %240 = arith.select %238, %239, %232 : vector<8x128xi1>, vector<8x128xf32>
    %241 = arith.select %238, %237, %233 : vector<8x128xi1>, vector<8x128xf32>
    %c5_113 = arith.constant 5 : index
    %c0_114 = arith.constant 0 : index
    %242 = vector.load %arg3[%c5_113, %c0_114] : memref<8x128xf32, #tpu.memory_space<vmem>>, vector<1x128xf32>
    %243 = vector.broadcast %242 : vector<1x128xf32> to vector<8x128xf32>
    %244 = vector.broadcast %5 : vector<8x1xf32> to vector<8x128xf32>
    %245 = arith.addf %243, %244 : vector<8x128xf32>
    %246 = arith.cmpf ogt, %245, %241 : vector<8x128xf32>
    %cst_115 = arith.constant 5.000000e+00 : f32
    %247 = vector.broadcast %cst_115 : f32 to vector<8x128xf32>
    %248 = arith.select %246, %247, %240 : vector<8x128xi1>, vector<8x128xf32>
    %249 = arith.select %246, %245, %241 : vector<8x128xi1>, vector<8x128xf32>
    %c6_116 = arith.constant 6 : index
    %c0_117 = arith.constant 0 : index
    %250 = vector.load %arg3[%c6_116, %c0_117] : memref<8x128xf32, #tpu.memory_space<vmem>>, vector<1x128xf32>
    %251 = vector.broadcast %250 : vector<1x128xf32> to vector<8x128xf32>
    %252 = vector.broadcast %6 : vector<8x1xf32> to vector<8x128xf32>
    %253 = arith.addf %251, %252 : vector<8x128xf32>
    %254 = arith.cmpf ogt, %253, %249 : vector<8x128xf32>
    %cst_118 = arith.constant 6.000000e+00 : f32
    %255 = vector.broadcast %cst_118 : f32 to vector<8x128xf32>
    %256 = arith.select %254, %255, %248 : vector<8x128xi1>, vector<8x128xf32>
    %257 = arith.select %254, %253, %249 : vector<8x128xi1>, vector<8x128xf32>
    %c7_119 = arith.constant 7 : index
    %c0_120 = arith.constant 0 : index
    %258 = vector.load %arg3[%c7_119, %c0_120] : memref<8x128xf32, #tpu.memory_space<vmem>>, vector<1x128xf32>
    %259 = vector.broadcast %258 : vector<1x128xf32> to vector<8x128xf32>
    %260 = vector.broadcast %7 : vector<8x1xf32> to vector<8x128xf32>
    %261 = arith.addf %259, %260 : vector<8x128xf32>
    %262 = arith.cmpf ogt, %261, %257 : vector<8x128xf32>
    %cst_121 = arith.constant 7.000000e+00 : f32
    %263 = vector.broadcast %cst_121 : f32 to vector<8x128xf32>
    %264 = arith.select %262, %263, %256 : vector<8x128xi1>, vector<8x128xf32>
    %265 = arith.select %262, %261, %257 : vector<8x128xi1>, vector<8x128xf32>
    %c24_122 = arith.constant 24 : index
    %c0_123 = arith.constant 0 : index
    %266 = vector.load %arg4[%c24_122, %c0_123] : memref<56x128xf32, #tpu.memory_space<vmem>>, vector<8x128xf32>
    tpu.vector_store %arg4[%c24_122, %c0_123], %264 {strides = array<i32>} : memref<56x128xf32, #tpu.memory_space<vmem>>, vector<8x128xf32>,
    %c32 = arith.constant 32 : index
    %c0_124 = arith.constant 0 : index
    %267 = vector.load %arg0[%c32, %c0_124] : memref<64x128xf32, #tpu.memory_space<vmem>>, vector<8x128xf32>
    %268 = arith.addf %265, %267 : vector<8x128xf32>
    %c0_125 = arith.constant 0 : index
    %c0_126 = arith.constant 0 : index
    %269 = vector.load %arg3[%c0_125, %c0_126] : memref<8x128xf32, #tpu.memory_space<vmem>>, vector<8x128xf32>
    tpu.vector_store %arg3[%c0_125, %c0_126], %268 {strides = array<i32>} : memref<8x128xf32, #tpu.memory_space<vmem>>, vector<8x128xf32>,
    %c0_127 = arith.constant 0 : index
    %c0_128 = arith.constant 0 : index
    %270 = vector.load %arg3[%c0_127, %c0_128] : memref<8x128xf32, #tpu.memory_space<vmem>>, vector<1x128xf32>
    %271 = vector.broadcast %270 : vector<1x128xf32> to vector<8x128xf32>
    %272 = vector.broadcast %0 : vector<8x1xf32> to vector<8x128xf32>
    %273 = arith.addf %271, %272 : vector<8x128xf32>
    %cst_129 = arith.constant 0.000000e+00 : f32
    %274 = vector.broadcast %cst_129 : f32 to vector<8x128xf32>
    %c1_130 = arith.constant 1 : index
    %c0_131 = arith.constant 0 : index
    %275 = vector.load %arg3[%c1_130, %c0_131] : memref<8x128xf32, #tpu.memory_space<vmem>>, vector<1x128xf32>
    %276 = vector.broadcast %275 : vector<1x128xf32> to vector<8x128xf32>
    %277 = vector.broadcast %1 : vector<8x1xf32> to vector<8x128xf32>
    %278 = arith.addf %276, %277 : vector<8x128xf32>
    %279 = arith.cmpf ogt, %278, %273 : vector<8x128xf32>
    %cst_132 = arith.constant 1.000000e+00 : f32
    %280 = vector.broadcast %cst_132 : f32 to vector<8x128xf32>
    %281 = arith.select %279, %280, %274 : vector<8x128xi1>, vector<8x128xf32>
    %282 = arith.select %279, %278, %273 : vector<8x128xi1>, vector<8x128xf32>
    %c2_133 = arith.constant 2 : index
    %c0_134 = arith.constant 0 : index
    %283 = vector.load %arg3[%c2_133, %c0_134] : memref<8x128xf32, #tpu.memory_space<vmem>>, vector<1x128xf32>
    %284 = vector.broadcast %283 : vector<1x128xf32> to vector<8x128xf32>
    %285 = vector.broadcast %2 : vector<8x1xf32> to vector<8x128xf32>
    %286 = arith.addf %284, %285 : vector<8x128xf32>
    %287 = arith.cmpf ogt, %286, %282 : vector<8x128xf32>
    %cst_135 = arith.constant 2.000000e+00 : f32
    %288 = vector.broadcast %cst_135 : f32 to vector<8x128xf32>
    %289 = arith.select %287, %288, %281 : vector<8x128xi1>, vector<8x128xf32>
    %290 = arith.select %287, %286, %282 : vector<8x128xi1>, vector<8x128xf32>
    %c3_136 = arith.constant 3 : index
    %c0_137 = arith.constant 0 : index
    %291 = vector.load %arg3[%c3_136, %c0_137] : memref<8x128xf32, #tpu.memory_space<vmem>>, vector<1x128xf32>
    %292 = vector.broadcast %291 : vector<1x128xf32> to vector<8x128xf32>
    %293 = vector.broadcast %3 : vector<8x1xf32> to vector<8x128xf32>
    %294 = arith.addf %292, %293 : vector<8x128xf32>
    %295 = arith.cmpf ogt, %294, %290 : vector<8x128xf32>
    %cst_138 = arith.constant 3.000000e+00 : f32
    %296 = vector.broadcast %cst_138 : f32 to vector<8x128xf32>
    %297 = arith.select %295, %296, %289 : vector<8x128xi1>, vector<8x128xf32>
    %298 = arith.select %295, %294, %290 : vector<8x128xi1>, vector<8x128xf32>
    %c4_139 = arith.constant 4 : index
    %c0_140 = arith.constant 0 : index
    %299 = vector.load %arg3[%c4_139, %c0_140] : memref<8x128xf32, #tpu.memory_space<vmem>>, vector<1x128xf32>
    %300 = vector.broadcast %299 : vector<1x128xf32> to vector<8x128xf32>
    %301 = vector.broadcast %4 : vector<8x1xf32> to vector<8x128xf32>
    %302 = arith.addf %300, %301 : vector<8x128xf32>
    %303 = arith.cmpf ogt, %302, %298 : vector<8x128xf32>
    %cst_141 = arith.constant 4.000000e+00 : f32
    %304 = vector.broadcast %cst_141 : f32 to vector<8x128xf32>
    %305 = arith.select %303, %304, %297 : vector<8x128xi1>, vector<8x128xf32>
    %306 = arith.select %303, %302, %298 : vector<8x128xi1>, vector<8x128xf32>
    %c5_142 = arith.constant 5 : index
    %c0_143 = arith.constant 0 : index
    %307 = vector.load %arg3[%c5_142, %c0_143] : memref<8x128xf32, #tpu.memory_space<vmem>>, vector<1x128xf32>
    %308 = vector.broadcast %307 : vector<1x128xf32> to vector<8x128xf32>
    %309 = vector.broadcast %5 : vector<8x1xf32> to vector<8x128xf32>
    %310 = arith.addf %308, %309 : vector<8x128xf32>
    %311 = arith.cmpf ogt, %310, %306 : vector<8x128xf32>
    %cst_144 = arith.constant 5.000000e+00 : f32
    %312 = vector.broadcast %cst_144 : f32 to vector<8x128xf32>
    %313 = arith.select %311, %312, %305 : vector<8x128xi1>, vector<8x128xf32>
    %314 = arith.select %311, %310, %306 : vector<8x128xi1>, vector<8x128xf32>
    %c6_145 = arith.constant 6 : index
    %c0_146 = arith.constant 0 : index
    %315 = vector.load %arg3[%c6_145, %c0_146] : memref<8x128xf32, #tpu.memory_space<vmem>>, vector<1x128xf32>
    %316 = vector.broadcast %315 : vector<1x128xf32> to vector<8x128xf32>
    %317 = vector.broadcast %6 : vector<8x1xf32> to vector<8x128xf32>
    %318 = arith.addf %316, %317 : vector<8x128xf32>
    %319 = arith.cmpf ogt, %318, %314 : vector<8x128xf32>
    %cst_147 = arith.constant 6.000000e+00 : f32
    %320 = vector.broadcast %cst_147 : f32 to vector<8x128xf32>
    %321 = arith.select %319, %320, %313 : vector<8x128xi1>, vector<8x128xf32>
    %322 = arith.select %319, %318, %314 : vector<8x128xi1>, vector<8x128xf32>
    %c7_148 = arith.constant 7 : index
    %c0_149 = arith.constant 0 : index
    %323 = vector.load %arg3[%c7_148, %c0_149] : memref<8x128xf32, #tpu.memory_space<vmem>>, vector<1x128xf32>
    %324 = vector.broadcast %323 : vector<1x128xf32> to vector<8x128xf32>
    %325 = vector.broadcast %7 : vector<8x1xf32> to vector<8x128xf32>
    %326 = arith.addf %324, %325 : vector<8x128xf32>
    %327 = arith.cmpf ogt, %326, %322 : vector<8x128xf32>
    %cst_150 = arith.constant 7.000000e+00 : f32
    %328 = vector.broadcast %cst_150 : f32 to vector<8x128xf32>
    %329 = arith.select %327, %328, %321 : vector<8x128xi1>, vector<8x128xf32>
    %330 = arith.select %327, %326, %322 : vector<8x128xi1>, vector<8x128xf32>
    %c32_151 = arith.constant 32 : index
    %c0_152 = arith.constant 0 : index
    %331 = vector.load %arg4[%c32_151, %c0_152] : memref<56x128xf32, #tpu.memory_space<vmem>>, vector<8x128xf32>
    tpu.vector_store %arg4[%c32_151, %c0_152], %329 {strides = array<i32>} : memref<56x128xf32, #tpu.memory_space<vmem>>, vector<8x128xf32>,
    %c40 = arith.constant 40 : index
    %c0_153 = arith.constant 0 : index
    %332 = vector.load %arg0[%c40, %c0_153] : memref<64x128xf32, #tpu.memory_space<vmem>>, vector<8x128xf32>
    %333 = arith.addf %330, %332 : vector<8x128xf32>
    %c0_154 = arith.constant 0 : index
    %c0_155 = arith.constant 0 : index
    %334 = vector.load %arg3[%c0_154, %c0_155] : memref<8x128xf32, #tpu.memory_space<vmem>>, vector<8x128xf32>
    tpu.vector_store %arg3[%c0_154, %c0_155], %333 {strides = array<i32>} : memref<8x128xf32, #tpu.memory_space<vmem>>, vector<8x128xf32>,
    %c0_156 = arith.constant 0 : index
    %c0_157 = arith.constant 0 : index
    %335 = vector.load %arg3[%c0_156, %c0_157] : memref<8x128xf32, #tpu.memory_space<vmem>>, vector<1x128xf32>
    %336 = vector.broadcast %335 : vector<1x128xf32> to vector<8x128xf32>
    %337 = vector.broadcast %0 : vector<8x1xf32> to vector<8x128xf32>
    %338 = arith.addf %336, %337 : vector<8x128xf32>
    %cst_158 = arith.constant 0.000000e+00 : f32
    %339 = vector.broadcast %cst_158 : f32 to vector<8x128xf32>
    %c1_159 = arith.constant 1 : index
    %c0_160 = arith.constant 0 : index
    %340 = vector.load %arg3[%c1_159, %c0_160] : memref<8x128xf32, #tpu.memory_space<vmem>>, vector<1x128xf32>
    %341 = vector.broadcast %340 : vector<1x128xf32> to vector<8x128xf32>
    %342 = vector.broadcast %1 : vector<8x1xf32> to vector<8x128xf32>
    %343 = arith.addf %341, %342 : vector<8x128xf32>
    %344 = arith.cmpf ogt, %343, %338 : vector<8x128xf32>
    %cst_161 = arith.constant 1.000000e+00 : f32
    %345 = vector.broadcast %cst_161 : f32 to vector<8x128xf32>
    %346 = arith.select %344, %345, %339 : vector<8x128xi1>, vector<8x128xf32>
    %347 = arith.select %344, %343, %338 : vector<8x128xi1>, vector<8x128xf32>
    %c2_162 = arith.constant 2 : index
    %c0_163 = arith.constant 0 : index
    %348 = vector.load %arg3[%c2_162, %c0_163] : memref<8x128xf32, #tpu.memory_space<vmem>>, vector<1x128xf32>
    %349 = vector.broadcast %348 : vector<1x128xf32> to vector<8x128xf32>
    %350 = vector.broadcast %2 : vector<8x1xf32> to vector<8x128xf32>
    %351 = arith.addf %349, %350 : vector<8x128xf32>
    %352 = arith.cmpf ogt, %351, %347 : vector<8x128xf32>
    %cst_164 = arith.constant 2.000000e+00 : f32
    %353 = vector.broadcast %cst_164 : f32 to vector<8x128xf32>
    %354 = arith.select %352, %353, %346 : vector<8x128xi1>, vector<8x128xf32>
    %355 = arith.select %352, %351, %347 : vector<8x128xi1>, vector<8x128xf32>
    %c3_165 = arith.constant 3 : index
    %c0_166 = arith.constant 0 : index
    %356 = vector.load %arg3[%c3_165, %c0_166] : memref<8x128xf32, #tpu.memory_space<vmem>>, vector<1x128xf32>
    %357 = vector.broadcast %356 : vector<1x128xf32> to vector<8x128xf32>
    %358 = vector.broadcast %3 : vector<8x1xf32> to vector<8x128xf32>
    %359 = arith.addf %357, %358 : vector<8x128xf32>
    %360 = arith.cmpf ogt, %359, %355 : vector<8x128xf32>
    %cst_167 = arith.constant 3.000000e+00 : f32
    %361 = vector.broadcast %cst_167 : f32 to vector<8x128xf32>
    %362 = arith.select %360, %361, %354 : vector<8x128xi1>, vector<8x128xf32>
    %363 = arith.select %360, %359, %355 : vector<8x128xi1>, vector<8x128xf32>
    %c4_168 = arith.constant 4 : index
    %c0_169 = arith.constant 0 : index
    %364 = vector.load %arg3[%c4_168, %c0_169] : memref<8x128xf32, #tpu.memory_space<vmem>>, vector<1x128xf32>
    %365 = vector.broadcast %364 : vector<1x128xf32> to vector<8x128xf32>
    %366 = vector.broadcast %4 : vector<8x1xf32> to vector<8x128xf32>
    %367 = arith.addf %365, %366 : vector<8x128xf32>
    %368 = arith.cmpf ogt, %367, %363 : vector<8x128xf32>
    %cst_170 = arith.constant 4.000000e+00 : f32
    %369 = vector.broadcast %cst_170 : f32 to vector<8x128xf32>
    %370 = arith.select %368, %369, %362 : vector<8x128xi1>, vector<8x128xf32>
    %371 = arith.select %368, %367, %363 : vector<8x128xi1>, vector<8x128xf32>
    %c5_171 = arith.constant 5 : index
    %c0_172 = arith.constant 0 : index
    %372 = vector.load %arg3[%c5_171, %c0_172] : memref<8x128xf32, #tpu.memory_space<vmem>>, vector<1x128xf32>
    %373 = vector.broadcast %372 : vector<1x128xf32> to vector<8x128xf32>
    %374 = vector.broadcast %5 : vector<8x1xf32> to vector<8x128xf32>
    %375 = arith.addf %373, %374 : vector<8x128xf32>
    %376 = arith.cmpf ogt, %375, %371 : vector<8x128xf32>
    %cst_173 = arith.constant 5.000000e+00 : f32
    %377 = vector.broadcast %cst_173 : f32 to vector<8x128xf32>
    %378 = arith.select %376, %377, %370 : vector<8x128xi1>, vector<8x128xf32>
    %379 = arith.select %376, %375, %371 : vector<8x128xi1>, vector<8x128xf32>
    %c6_174 = arith.constant 6 : index
    %c0_175 = arith.constant 0 : index
    %380 = vector.load %arg3[%c6_174, %c0_175] : memref<8x128xf32, #tpu.memory_space<vmem>>, vector<1x128xf32>
    %381 = vector.broadcast %380 : vector<1x128xf32> to vector<8x128xf32>
    %382 = vector.broadcast %6 : vector<8x1xf32> to vector<8x128xf32>
    %383 = arith.addf %381, %382 : vector<8x128xf32>
    %384 = arith.cmpf ogt, %383, %379 : vector<8x128xf32>
    %cst_176 = arith.constant 6.000000e+00 : f32
    %385 = vector.broadcast %cst_176 : f32 to vector<8x128xf32>
    %386 = arith.select %384, %385, %378 : vector<8x128xi1>, vector<8x128xf32>
    %387 = arith.select %384, %383, %379 : vector<8x128xi1>, vector<8x128xf32>
    %c7_177 = arith.constant 7 : index
    %c0_178 = arith.constant 0 : index
    %388 = vector.load %arg3[%c7_177, %c0_178] : memref<8x128xf32, #tpu.memory_space<vmem>>, vector<1x128xf32>
    %389 = vector.broadcast %388 : vector<1x128xf32> to vector<8x128xf32>
    %390 = vector.broadcast %7 : vector<8x1xf32> to vector<8x128xf32>
    %391 = arith.addf %389, %390 : vector<8x128xf32>
    %392 = arith.cmpf ogt, %391, %387 : vector<8x128xf32>
    %cst_179 = arith.constant 7.000000e+00 : f32
    %393 = vector.broadcast %cst_179 : f32 to vector<8x128xf32>
    %394 = arith.select %392, %393, %386 : vector<8x128xi1>, vector<8x128xf32>
    %395 = arith.select %392, %391, %387 : vector<8x128xi1>, vector<8x128xf32>
    %c40_180 = arith.constant 40 : index
    %c0_181 = arith.constant 0 : index
    %396 = vector.load %arg4[%c40_180, %c0_181] : memref<56x128xf32, #tpu.memory_space<vmem>>, vector<8x128xf32>
    tpu.vector_store %arg4[%c40_180, %c0_181], %394 {strides = array<i32>} : memref<56x128xf32, #tpu.memory_space<vmem>>, vector<8x128xf32>,
    %c48 = arith.constant 48 : index
    %c0_182 = arith.constant 0 : index
    %397 = vector.load %arg0[%c48, %c0_182] : memref<64x128xf32, #tpu.memory_space<vmem>>, vector<8x128xf32>
    %398 = arith.addf %395, %397 : vector<8x128xf32>
    %c0_183 = arith.constant 0 : index
    %c0_184 = arith.constant 0 : index
    %399 = vector.load %arg3[%c0_183, %c0_184] : memref<8x128xf32, #tpu.memory_space<vmem>>, vector<8x128xf32>
    tpu.vector_store %arg3[%c0_183, %c0_184], %398 {strides = array<i32>} : memref<8x128xf32, #tpu.memory_space<vmem>>, vector<8x128xf32>,
    %c0_185 = arith.constant 0 : index
    %c0_186 = arith.constant 0 : index
    %400 = vector.load %arg3[%c0_185, %c0_186] : memref<8x128xf32, #tpu.memory_space<vmem>>, vector<1x128xf32>
    %401 = vector.broadcast %400 : vector<1x128xf32> to vector<8x128xf32>
    %402 = vector.broadcast %0 : vector<8x1xf32> to vector<8x128xf32>
    %403 = arith.addf %401, %402 : vector<8x128xf32>
    %cst_187 = arith.constant 0.000000e+00 : f32
    %404 = vector.broadcast %cst_187 : f32 to vector<8x128xf32>
    %c1_188 = arith.constant 1 : index
    %c0_189 = arith.constant 0 : index
    %405 = vector.load %arg3[%c1_188, %c0_189] : memref<8x128xf32, #tpu.memory_space<vmem>>, vector<1x128xf32>
    %406 = vector.broadcast %405 : vector<1x128xf32> to vector<8x128xf32>
    %407 = vector.broadcast %1 : vector<8x1xf32> to vector<8x128xf32>
    %408 = arith.addf %406, %407 : vector<8x128xf32>
    %409 = arith.cmpf ogt, %408, %403 : vector<8x128xf32>
    %cst_190 = arith.constant 1.000000e+00 : f32
    %410 = vector.broadcast %cst_190 : f32 to vector<8x128xf32>
    %411 = arith.select %409, %410, %404 : vector<8x128xi1>, vector<8x128xf32>
    %412 = arith.select %409, %408, %403 : vector<8x128xi1>, vector<8x128xf32>
    %c2_191 = arith.constant 2 : index
    %c0_192 = arith.constant 0 : index
    %413 = vector.load %arg3[%c2_191, %c0_192] : memref<8x128xf32, #tpu.memory_space<vmem>>, vector<1x128xf32>
    %414 = vector.broadcast %413 : vector<1x128xf32> to vector<8x128xf32>
    %415 = vector.broadcast %2 : vector<8x1xf32> to vector<8x128xf32>
    %416 = arith.addf %414, %415 : vector<8x128xf32>
    %417 = arith.cmpf ogt, %416, %412 : vector<8x128xf32>
    %cst_193 = arith.constant 2.000000e+00 : f32
    %418 = vector.broadcast %cst_193 : f32 to vector<8x128xf32>
    %419 = arith.select %417, %418, %411 : vector<8x128xi1>, vector<8x128xf32>
    %420 = arith.select %417, %416, %412 : vector<8x128xi1>, vector<8x128xf32>
    %c3_194 = arith.constant 3 : index
    %c0_195 = arith.constant 0 : index
    %421 = vector.load %arg3[%c3_194, %c0_195] : memref<8x128xf32, #tpu.memory_space<vmem>>, vector<1x128xf32>
    %422 = vector.broadcast %421 : vector<1x128xf32> to vector<8x128xf32>
    %423 = vector.broadcast %3 : vector<8x1xf32> to vector<8x128xf32>
    %424 = arith.addf %422, %423 : vector<8x128xf32>
    %425 = arith.cmpf ogt, %424, %420 : vector<8x128xf32>
    %cst_196 = arith.constant 3.000000e+00 : f32
    %426 = vector.broadcast %cst_196 : f32 to vector<8x128xf32>
    %427 = arith.select %425, %426, %419 : vector<8x128xi1>, vector<8x128xf32>
    %428 = arith.select %425, %424, %420 : vector<8x128xi1>, vector<8x128xf32>
    %c4_197 = arith.constant 4 : index
    %c0_198 = arith.constant 0 : index
    %429 = vector.load %arg3[%c4_197, %c0_198] : memref<8x128xf32, #tpu.memory_space<vmem>>, vector<1x128xf32>
    %430 = vector.broadcast %429 : vector<1x128xf32> to vector<8x128xf32>
    %431 = vector.broadcast %4 : vector<8x1xf32> to vector<8x128xf32>
    %432 = arith.addf %430, %431 : vector<8x128xf32>
    %433 = arith.cmpf ogt, %432, %428 : vector<8x128xf32>
    %cst_199 = arith.constant 4.000000e+00 : f32
    %434 = vector.broadcast %cst_199 : f32 to vector<8x128xf32>
    %435 = arith.select %433, %434, %427 : vector<8x128xi1>, vector<8x128xf32>
    %436 = arith.select %433, %432, %428 : vector<8x128xi1>, vector<8x128xf32>
    %c5_200 = arith.constant 5 : index
    %c0_201 = arith.constant 0 : index
    %437 = vector.load %arg3[%c5_200, %c0_201] : memref<8x128xf32, #tpu.memory_space<vmem>>, vector<1x128xf32>
    %438 = vector.broadcast %437 : vector<1x128xf32> to vector<8x128xf32>
    %439 = vector.broadcast %5 : vector<8x1xf32> to vector<8x128xf32>
    %440 = arith.addf %438, %439 : vector<8x128xf32>
    %441 = arith.cmpf ogt, %440, %436 : vector<8x128xf32>
    %cst_202 = arith.constant 5.000000e+00 : f32
    %442 = vector.broadcast %cst_202 : f32 to vector<8x128xf32>
    %443 = arith.select %441, %442, %435 : vector<8x128xi1>, vector<8x128xf32>
    %444 = arith.select %441, %440, %436 : vector<8x128xi1>, vector<8x128xf32>
    %c6_203 = arith.constant 6 : index
    %c0_204 = arith.constant 0 : index
    %445 = vector.load %arg3[%c6_203, %c0_204] : memref<8x128xf32, #tpu.memory_space<vmem>>, vector<1x128xf32>
    %446 = vector.broadcast %445 : vector<1x128xf32> to vector<8x128xf32>
    %447 = vector.broadcast %6 : vector<8x1xf32> to vector<8x128xf32>
    %448 = arith.addf %446, %447 : vector<8x128xf32>
    %449 = arith.cmpf ogt, %448, %444 : vector<8x128xf32>
    %cst_205 = arith.constant 6.000000e+00 : f32
    %450 = vector.broadcast %cst_205 : f32 to vector<8x128xf32>
    %451 = arith.select %449, %450, %443 : vector<8x128xi1>, vector<8x128xf32>
    %452 = arith.select %449, %448, %444 : vector<8x128xi1>, vector<8x128xf32>
    %c7_206 = arith.constant 7 : index
    %c0_207 = arith.constant 0 : index
    %453 = vector.load %arg3[%c7_206, %c0_207] : memref<8x128xf32, #tpu.memory_space<vmem>>, vector<1x128xf32>
    %454 = vector.broadcast %453 : vector<1x128xf32> to vector<8x128xf32>
    %455 = vector.broadcast %7 : vector<8x1xf32> to vector<8x128xf32>
    %456 = arith.addf %454, %455 : vector<8x128xf32>
    %457 = arith.cmpf ogt, %456, %452 : vector<8x128xf32>
    %cst_208 = arith.constant 7.000000e+00 : f32
    %458 = vector.broadcast %cst_208 : f32 to vector<8x128xf32>
    %459 = arith.select %457, %458, %451 : vector<8x128xi1>, vector<8x128xf32>
    %460 = arith.select %457, %456, %452 : vector<8x128xi1>, vector<8x128xf32>
    %c48_209 = arith.constant 48 : index
    %c0_210 = arith.constant 0 : index
    %461 = vector.load %arg4[%c48_209, %c0_210] : memref<56x128xf32, #tpu.memory_space<vmem>>, vector<8x128xf32>
    tpu.vector_store %arg4[%c48_209, %c0_210], %459 {strides = array<i32>} : memref<56x128xf32, #tpu.memory_space<vmem>>, vector<8x128xf32>,
    %c56 = arith.constant 56 : index
    %c0_211 = arith.constant 0 : index
    %462 = vector.load %arg0[%c56, %c0_211] : memref<64x128xf32, #tpu.memory_space<vmem>>, vector<8x128xf32>
    %463 = arith.addf %460, %462 : vector<8x128xf32>
    %c0_212 = arith.constant 0 : index
    %c0_213 = arith.constant 0 : index
    %464 = vector.load %arg3[%c0_212, %c0_213] : memref<8x128xf32, #tpu.memory_space<vmem>>, vector<8x128xf32>
    tpu.vector_store %arg3[%c0_212, %c0_213], %463 {strides = array<i32>} : memref<8x128xf32, #tpu.memory_space<vmem>>, vector<8x128xf32>,
    %c0_214 = arith.constant 0 : index
    %c0_215 = arith.constant 0 : index
    %465 = vector.load %arg3[%c0_214, %c0_215] : memref<8x128xf32, #tpu.memory_space<vmem>>, vector<1x128xf32>
    %cst_216 = arith.constant 0.000000e+00 : f32
    %466 = vector.broadcast %cst_216 : f32 to vector<1x128xf32>
    %c1_217 = arith.constant 1 : index
    %c0_218 = arith.constant 0 : index
    %467 = vector.load %arg3[%c1_217, %c0_218] : memref<8x128xf32, #tpu.memory_space<vmem>>, vector<1x128xf32>
    %468 = arith.cmpf ogt, %467, %465 : vector<1x128xf32>
    %cst_219 = arith.constant 1.000000e+00 : f32
    %469 = vector.broadcast %cst_219 : f32 to vector<1x128xf32>
    %470 = arith.select %468, %469, %466 : vector<1x128xi1>, vector<1x128xf32>
    %471 = arith.select %468, %467, %465 : vector<1x128xi1>, vector<1x128xf32>
    %c2_220 = arith.constant 2 : index
    %c0_221 = arith.constant 0 : index
    %472 = vector.load %arg3[%c2_220, %c0_221] : memref<8x128xf32, #tpu.memory_space<vmem>>, vector<1x128xf32>
    %473 = arith.cmpf ogt, %472, %471 : vector<1x128xf32>
    %cst_222 = arith.constant 2.000000e+00 : f32
    %474 = vector.broadcast %cst_222 : f32 to vector<1x128xf32>
    %475 = arith.select %473, %474, %470 : vector<1x128xi1>, vector<1x128xf32>
    %476 = arith.select %473, %472, %471 : vector<1x128xi1>, vector<1x128xf32>
    %c3_223 = arith.constant 3 : index
    %c0_224 = arith.constant 0 : index
    %477 = vector.load %arg3[%c3_223, %c0_224] : memref<8x128xf32, #tpu.memory_space<vmem>>, vector<1x128xf32>
    %478 = arith.cmpf ogt, %477, %476 : vector<1x128xf32>
    %cst_225 = arith.constant 3.000000e+00 : f32
    %479 = vector.broadcast %cst_225 : f32 to vector<1x128xf32>
    %480 = arith.select %478, %479, %475 : vector<1x128xi1>, vector<1x128xf32>
    %481 = arith.select %478, %477, %476 : vector<1x128xi1>, vector<1x128xf32>
    %c4_226 = arith.constant 4 : index
    %c0_227 = arith.constant 0 : index
    %482 = vector.load %arg3[%c4_226, %c0_227] : memref<8x128xf32, #tpu.memory_space<vmem>>, vector<1x128xf32>
    %483 = arith.cmpf ogt, %482, %481 : vector<1x128xf32>
    %cst_228 = arith.constant 4.000000e+00 : f32
    %484 = vector.broadcast %cst_228 : f32 to vector<1x128xf32>
    %485 = arith.select %483, %484, %480 : vector<1x128xi1>, vector<1x128xf32>
    %486 = arith.select %483, %482, %481 : vector<1x128xi1>, vector<1x128xf32>
    %c5_229 = arith.constant 5 : index
    %c0_230 = arith.constant 0 : index
    %487 = vector.load %arg3[%c5_229, %c0_230] : memref<8x128xf32, #tpu.memory_space<vmem>>, vector<1x128xf32>
    %488 = arith.cmpf ogt, %487, %486 : vector<1x128xf32>
    %cst_231 = arith.constant 5.000000e+00 : f32
    %489 = vector.broadcast %cst_231 : f32 to vector<1x128xf32>
    %490 = arith.select %488, %489, %485 : vector<1x128xi1>, vector<1x128xf32>
    %491 = arith.select %488, %487, %486 : vector<1x128xi1>, vector<1x128xf32>
    %c6_232 = arith.constant 6 : index
    %c0_233 = arith.constant 0 : index
    %492 = vector.load %arg3[%c6_232, %c0_233] : memref<8x128xf32, #tpu.memory_space<vmem>>, vector<1x128xf32>
    %493 = arith.cmpf ogt, %492, %491 : vector<1x128xf32>
    %cst_234 = arith.constant 6.000000e+00 : f32
    %494 = vector.broadcast %cst_234 : f32 to vector<1x128xf32>
    %495 = arith.select %493, %494, %490 : vector<1x128xi1>, vector<1x128xf32>
    %496 = arith.select %493, %492, %491 : vector<1x128xi1>, vector<1x128xf32>
    %c7_235 = arith.constant 7 : index
    %c0_236 = arith.constant 0 : index
    %497 = vector.load %arg3[%c7_235, %c0_236] : memref<8x128xf32, #tpu.memory_space<vmem>>, vector<1x128xf32>
    %498 = arith.cmpf ogt, %497, %496 : vector<1x128xf32>
    %cst_237 = arith.constant 7.000000e+00 : f32
    %499 = vector.broadcast %cst_237 : f32 to vector<1x128xf32>
    %500 = arith.select %498, %499, %495 : vector<1x128xi1>, vector<1x128xf32>
    %501 = arith.select %498, %497, %496 : vector<1x128xi1>, vector<1x128xf32>
    %c7_238 = arith.constant 7 : index
    %c0_239 = arith.constant 0 : index
    %502 = vector.load %arg2[%c7_238, %c0_239] : memref<9x128xf32, #tpu.memory_space<vmem>>, vector<1x128xf32>
    tpu.vector_store %arg2[%c7_238, %c0_239], %500 {strides = array<i32>} : memref<9x128xf32, #tpu.memory_space<vmem>>, vector<1x128xf32>,
    %cst_240 = arith.constant 0.000000e+00 : f32
    %503 = vector.broadcast %cst_240 : f32 to vector<1x128xf32>
    %c48_241 = arith.constant 48 : index
    %c0_242 = arith.constant 0 : index
    %504 = vector.load %arg4[%c48_241, %c0_242] : memref<56x128xf32, #tpu.memory_space<vmem>>, vector<1x128xf32>
    %cst_243 = arith.constant 0.000000e+00 : f32
    %505 = vector.broadcast %cst_243 : f32 to vector<1x128xf32>
    %506 = arith.cmpf oeq, %500, %505 : vector<1x128xf32>
    %507 = arith.select %506, %504, %503 : vector<1x128xi1>, vector<1x128xf32>
    %c49 = arith.constant 49 : index
    %c0_244 = arith.constant 0 : index
    %508 = vector.load %arg4[%c49, %c0_244] : memref<56x128xf32, #tpu.memory_space<vmem>>, vector<1x128xf32>
    %cst_245 = arith.constant 1.000000e+00 : f32
    %509 = vector.broadcast %cst_245 : f32 to vector<1x128xf32>
    %510 = arith.cmpf oeq, %500, %509 : vector<1x128xf32>
    %511 = arith.select %510, %508, %507 : vector<1x128xi1>, vector<1x128xf32>
    %c50 = arith.constant 50 : index
    %c0_246 = arith.constant 0 : index
    %512 = vector.load %arg4[%c50, %c0_246] : memref<56x128xf32, #tpu.memory_space<vmem>>, vector<1x128xf32>
    %cst_247 = arith.constant 2.000000e+00 : f32
    %513 = vector.broadcast %cst_247 : f32 to vector<1x128xf32>
    %514 = arith.cmpf oeq, %500, %513 : vector<1x128xf32>
    %515 = arith.select %514, %512, %511 : vector<1x128xi1>, vector<1x128xf32>
    %c51 = arith.constant 51 : index
    %c0_248 = arith.constant 0 : index
    %516 = vector.load %arg4[%c51, %c0_248] : memref<56x128xf32, #tpu.memory_space<vmem>>, vector<1x128xf32>
    %cst_249 = arith.constant 3.000000e+00 : f32
    %517 = vector.broadcast %cst_249 : f32 to vector<1x128xf32>
    %518 = arith.cmpf oeq, %500, %517 : vector<1x128xf32>
    %519 = arith.select %518, %516, %515 : vector<1x128xi1>, vector<1x128xf32>
    %c52 = arith.constant 52 : index
    %c0_250 = arith.constant 0 : index
    %520 = vector.load %arg4[%c52, %c0_250] : memref<56x128xf32, #tpu.memory_space<vmem>>, vector<1x128xf32>
    %cst_251 = arith.constant 4.000000e+00 : f32
    %521 = vector.broadcast %cst_251 : f32 to vector<1x128xf32>
    %522 = arith.cmpf oeq, %500, %521 : vector<1x128xf32>
    %523 = arith.select %522, %520, %519 : vector<1x128xi1>, vector<1x128xf32>
    %c53 = arith.constant 53 : index
    %c0_252 = arith.constant 0 : index
    %524 = vector.load %arg4[%c53, %c0_252] : memref<56x128xf32, #tpu.memory_space<vmem>>, vector<1x128xf32>
    %cst_253 = arith.constant 5.000000e+00 : f32
    %525 = vector.broadcast %cst_253 : f32 to vector<1x128xf32>
    %526 = arith.cmpf oeq, %500, %525 : vector<1x128xf32>
    %527 = arith.select %526, %524, %523 : vector<1x128xi1>, vector<1x128xf32>
    %c54 = arith.constant 54 : index
    %c0_254 = arith.constant 0 : index
    %528 = vector.load %arg4[%c54, %c0_254] : memref<56x128xf32, #tpu.memory_space<vmem>>, vector<1x128xf32>
    %cst_255 = arith.constant 6.000000e+00 : f32
    %529 = vector.broadcast %cst_255 : f32 to vector<1x128xf32>
    %530 = arith.cmpf oeq, %500, %529 : vector<1x128xf32>
    %531 = arith.select %530, %528, %527 : vector<1x128xi1>, vector<1x128xf32>
    %c55 = arith.constant 55 : index
    %c0_256 = arith.constant 0 : index
    %532 = vector.load %arg4[%c55, %c0_256] : memref<56x128xf32, #tpu.memory_space<vmem>>, vector<1x128xf32>
    %cst_257 = arith.constant 7.000000e+00 : f32
    %533 = vector.broadcast %cst_257 : f32 to vector<1x128xf32>
    %534 = arith.cmpf oeq, %500, %533 : vector<1x128xf32>
    %535 = arith.select %534, %532, %531 : vector<1x128xi1>, vector<1x128xf32>
    %c6_258 = arith.constant 6 : index
    %c0_259 = arith.constant 0 : index
    %536 = vector.load %arg2[%c6_258, %c0_259] : memref<9x128xf32, #tpu.memory_space<vmem>>, vector<1x128xf32>
    tpu.vector_store %arg2[%c6_258, %c0_259], %535 {strides = array<i32>} : memref<9x128xf32, #tpu.memory_space<vmem>>, vector<1x128xf32>,
    %cst_260 = arith.constant 0.000000e+00 : f32
    %537 = vector.broadcast %cst_260 : f32 to vector<1x128xf32>
    %c40_261 = arith.constant 40 : index
    %c0_262 = arith.constant 0 : index
    %538 = vector.load %arg4[%c40_261, %c0_262] : memref<56x128xf32, #tpu.memory_space<vmem>>, vector<1x128xf32>
    %cst_263 = arith.constant 0.000000e+00 : f32
    %539 = vector.broadcast %cst_263 : f32 to vector<1x128xf32>
    %540 = arith.cmpf oeq, %535, %539 : vector<1x128xf32>
    %541 = arith.select %540, %538, %537 : vector<1x128xi1>, vector<1x128xf32>
    %c41 = arith.constant 41 : index
    %c0_264 = arith.constant 0 : index
    %542 = vector.load %arg4[%c41, %c0_264] : memref<56x128xf32, #tpu.memory_space<vmem>>, vector<1x128xf32>
    %cst_265 = arith.constant 1.000000e+00 : f32
    %543 = vector.broadcast %cst_265 : f32 to vector<1x128xf32>
    %544 = arith.cmpf oeq, %535, %543 : vector<1x128xf32>
    %545 = arith.select %544, %542, %541 : vector<1x128xi1>, vector<1x128xf32>
    %c42 = arith.constant 42 : index
    %c0_266 = arith.constant 0 : index
    %546 = vector.load %arg4[%c42, %c0_266] : memref<56x128xf32, #tpu.memory_space<vmem>>, vector<1x128xf32>
    %cst_267 = arith.constant 2.000000e+00 : f32
    %547 = vector.broadcast %cst_267 : f32 to vector<1x128xf32>
    %548 = arith.cmpf oeq, %535, %547 : vector<1x128xf32>
    %549 = arith.select %548, %546, %545 : vector<1x128xi1>, vector<1x128xf32>
    %c43 = arith.constant 43 : index
    %c0_268 = arith.constant 0 : index
    %550 = vector.load %arg4[%c43, %c0_268] : memref<56x128xf32, #tpu.memory_space<vmem>>, vector<1x128xf32>
    %cst_269 = arith.constant 3.000000e+00 : f32
    %551 = vector.broadcast %cst_269 : f32 to vector<1x128xf32>
    %552 = arith.cmpf oeq, %535, %551 : vector<1x128xf32>
    %553 = arith.select %552, %550, %549 : vector<1x128xi1>, vector<1x128xf32>
    %c44 = arith.constant 44 : index
    %c0_270 = arith.constant 0 : index
    %554 = vector.load %arg4[%c44, %c0_270] : memref<56x128xf32, #tpu.memory_space<vmem>>, vector<1x128xf32>
    %cst_271 = arith.constant 4.000000e+00 : f32
    %555 = vector.broadcast %cst_271 : f32 to vector<1x128xf32>
    %556 = arith.cmpf oeq, %535, %555 : vector<1x128xf32>
    %557 = arith.select %556, %554, %553 : vector<1x128xi1>, vector<1x128xf32>
    %c45 = arith.constant 45 : index
    %c0_272 = arith.constant 0 : index
    %558 = vector.load %arg4[%c45, %c0_272] : memref<56x128xf32, #tpu.memory_space<vmem>>, vector<1x128xf32>
    %cst_273 = arith.constant 5.000000e+00 : f32
    %559 = vector.broadcast %cst_273 : f32 to vector<1x128xf32>
    %560 = arith.cmpf oeq, %535, %559 : vector<1x128xf32>
    %561 = arith.select %560, %558, %557 : vector<1x128xi1>, vector<1x128xf32>
    %c46 = arith.constant 46 : index
    %c0_274 = arith.constant 0 : index
    %562 = vector.load %arg4[%c46, %c0_274] : memref<56x128xf32, #tpu.memory_space<vmem>>, vector<1x128xf32>
    %cst_275 = arith.constant 6.000000e+00 : f32
    %563 = vector.broadcast %cst_275 : f32 to vector<1x128xf32>
    %564 = arith.cmpf oeq, %535, %563 : vector<1x128xf32>
    %565 = arith.select %564, %562, %561 : vector<1x128xi1>, vector<1x128xf32>
    %c47 = arith.constant 47 : index
    %c0_276 = arith.constant 0 : index
    %566 = vector.load %arg4[%c47, %c0_276] : memref<56x128xf32, #tpu.memory_space<vmem>>, vector<1x128xf32>
    %cst_277 = arith.constant 7.000000e+00 : f32
    %567 = vector.broadcast %cst_277 : f32 to vector<1x128xf32>
    %568 = arith.cmpf oeq, %535, %567 : vector<1x128xf32>
    %569 = arith.select %568, %566, %565 : vector<1x128xi1>, vector<1x128xf32>
    %c5_278 = arith.constant 5 : index
    %c0_279 = arith.constant 0 : index
    %570 = vector.load %arg2[%c5_278, %c0_279] : memref<9x128xf32, #tpu.memory_space<vmem>>, vector<1x128xf32>
    tpu.vector_store %arg2[%c5_278, %c0_279], %569 {strides = array<i32>} : memref<9x128xf32, #tpu.memory_space<vmem>>, vector<1x128xf32>,
    %cst_280 = arith.constant 0.000000e+00 : f32
    %571 = vector.broadcast %cst_280 : f32 to vector<1x128xf32>
    %c32_281 = arith.constant 32 : index
    %c0_282 = arith.constant 0 : index
    %572 = vector.load %arg4[%c32_281, %c0_282] : memref<56x128xf32, #tpu.memory_space<vmem>>, vector<1x128xf32>
    %cst_283 = arith.constant 0.000000e+00 : f32
    %573 = vector.broadcast %cst_283 : f32 to vector<1x128xf32>
    %574 = arith.cmpf oeq, %569, %573 : vector<1x128xf32>
    %575 = arith.select %574, %572, %571 : vector<1x128xi1>, vector<1x128xf32>
    %c33 = arith.constant 33 : index
    %c0_284 = arith.constant 0 : index
    %576 = vector.load %arg4[%c33, %c0_284] : memref<56x128xf32, #tpu.memory_space<vmem>>, vector<1x128xf32>
    %cst_285 = arith.constant 1.000000e+00 : f32
    %577 = vector.broadcast %cst_285 : f32 to vector<1x128xf32>
    %578 = arith.cmpf oeq, %569, %577 : vector<1x128xf32>
    %579 = arith.select %578, %576, %575 : vector<1x128xi1>, vector<1x128xf32>
    %c34 = arith.constant 34 : index
    %c0_286 = arith.constant 0 : index
    %580 = vector.load %arg4[%c34, %c0_286] : memref<56x128xf32, #tpu.memory_space<vmem>>, vector<1x128xf32>
    %cst_287 = arith.constant 2.000000e+00 : f32
    %581 = vector.broadcast %cst_287 : f32 to vector<1x128xf32>
    %582 = arith.cmpf oeq, %569, %581 : vector<1x128xf32>
    %583 = arith.select %582, %580, %579 : vector<1x128xi1>, vector<1x128xf32>
    %c35 = arith.constant 35 : index
    %c0_288 = arith.constant 0 : index
    %584 = vector.load %arg4[%c35, %c0_288] : memref<56x128xf32, #tpu.memory_space<vmem>>, vector<1x128xf32>
    %cst_289 = arith.constant 3.000000e+00 : f32
    %585 = vector.broadcast %cst_289 : f32 to vector<1x128xf32>
    %586 = arith.cmpf oeq, %569, %585 : vector<1x128xf32>
    %587 = arith.select %586, %584, %583 : vector<1x128xi1>, vector<1x128xf32>
    %c36 = arith.constant 36 : index
    %c0_290 = arith.constant 0 : index
    %588 = vector.load %arg4[%c36, %c0_290] : memref<56x128xf32, #tpu.memory_space<vmem>>, vector<1x128xf32>
    %cst_291 = arith.constant 4.000000e+00 : f32
    %589 = vector.broadcast %cst_291 : f32 to vector<1x128xf32>
    %590 = arith.cmpf oeq, %569, %589 : vector<1x128xf32>
    %591 = arith.select %590, %588, %587 : vector<1x128xi1>, vector<1x128xf32>
    %c37 = arith.constant 37 : index
    %c0_292 = arith.constant 0 : index
    %592 = vector.load %arg4[%c37, %c0_292] : memref<56x128xf32, #tpu.memory_space<vmem>>, vector<1x128xf32>
    %cst_293 = arith.constant 5.000000e+00 : f32
    %593 = vector.broadcast %cst_293 : f32 to vector<1x128xf32>
    %594 = arith.cmpf oeq, %569, %593 : vector<1x128xf32>
    %595 = arith.select %594, %592, %591 : vector<1x128xi1>, vector<1x128xf32>
    %c38 = arith.constant 38 : index
    %c0_294 = arith.constant 0 : index
    %596 = vector.load %arg4[%c38, %c0_294] : memref<56x128xf32, #tpu.memory_space<vmem>>, vector<1x128xf32>
    %cst_295 = arith.constant 6.000000e+00 : f32
    %597 = vector.broadcast %cst_295 : f32 to vector<1x128xf32>
    %598 = arith.cmpf oeq, %569, %597 : vector<1x128xf32>
    %599 = arith.select %598, %596, %595 : vector<1x128xi1>, vector<1x128xf32>
    %c39 = arith.constant 39 : index
    %c0_296 = arith.constant 0 : index
    %600 = vector.load %arg4[%c39, %c0_296] : memref<56x128xf32, #tpu.memory_space<vmem>>, vector<1x128xf32>
    %cst_297 = arith.constant 7.000000e+00 : f32
    %601 = vector.broadcast %cst_297 : f32 to vector<1x128xf32>
    %602 = arith.cmpf oeq, %569, %601 : vector<1x128xf32>
    %603 = arith.select %602, %600, %599 : vector<1x128xi1>, vector<1x128xf32>
    %c4_298 = arith.constant 4 : index
    %c0_299 = arith.constant 0 : index
    %604 = vector.load %arg2[%c4_298, %c0_299] : memref<9x128xf32, #tpu.memory_space<vmem>>, vector<1x128xf32>
    tpu.vector_store %arg2[%c4_298, %c0_299], %603 {strides = array<i32>} : memref<9x128xf32, #tpu.memory_space<vmem>>, vector<1x128xf32>,
    %cst_300 = arith.constant 0.000000e+00 : f32
    %605 = vector.broadcast %cst_300 : f32 to vector<1x128xf32>
    %c24_301 = arith.constant 24 : index
    %c0_302 = arith.constant 0 : index
    %606 = vector.load %arg4[%c24_301, %c0_302] : memref<56x128xf32, #tpu.memory_space<vmem>>, vector<1x128xf32>
    %cst_303 = arith.constant 0.000000e+00 : f32
    %607 = vector.broadcast %cst_303 : f32 to vector<1x128xf32>
    %608 = arith.cmpf oeq, %603, %607 : vector<1x128xf32>
    %609 = arith.select %608, %606, %605 : vector<1x128xi1>, vector<1x128xf32>
    %c25 = arith.constant 25 : index
    %c0_304 = arith.constant 0 : index
    %610 = vector.load %arg4[%c25, %c0_304] : memref<56x128xf32, #tpu.memory_space<vmem>>, vector<1x128xf32>
    %cst_305 = arith.constant 1.000000e+00 : f32
    %611 = vector.broadcast %cst_305 : f32 to vector<1x128xf32>
    %612 = arith.cmpf oeq, %603, %611 : vector<1x128xf32>
    %613 = arith.select %612, %610, %609 : vector<1x128xi1>, vector<1x128xf32>
    %c26 = arith.constant 26 : index
    %c0_306 = arith.constant 0 : index
    %614 = vector.load %arg4[%c26, %c0_306] : memref<56x128xf32, #tpu.memory_space<vmem>>, vector<1x128xf32>
    %cst_307 = arith.constant 2.000000e+00 : f32
    %615 = vector.broadcast %cst_307 : f32 to vector<1x128xf32>
    %616 = arith.cmpf oeq, %603, %615 : vector<1x128xf32>
    %617 = arith.select %616, %614, %613 : vector<1x128xi1>, vector<1x128xf32>
    %c27 = arith.constant 27 : index
    %c0_308 = arith.constant 0 : index
    %618 = vector.load %arg4[%c27, %c0_308] : memref<56x128xf32, #tpu.memory_space<vmem>>, vector<1x128xf32>
    %cst_309 = arith.constant 3.000000e+00 : f32
    %619 = vector.broadcast %cst_309 : f32 to vector<1x128xf32>
    %620 = arith.cmpf oeq, %603, %619 : vector<1x128xf32>
    %621 = arith.select %620, %618, %617 : vector<1x128xi1>, vector<1x128xf32>
    %c28 = arith.constant 28 : index
    %c0_310 = arith.constant 0 : index
    %622 = vector.load %arg4[%c28, %c0_310] : memref<56x128xf32, #tpu.memory_space<vmem>>, vector<1x128xf32>
    %cst_311 = arith.constant 4.000000e+00 : f32
    %623 = vector.broadcast %cst_311 : f32 to vector<1x128xf32>
    %624 = arith.cmpf oeq, %603, %623 : vector<1x128xf32>
    %625 = arith.select %624, %622, %621 : vector<1x128xi1>, vector<1x128xf32>
    %c29 = arith.constant 29 : index
    %c0_312 = arith.constant 0 : index
    %626 = vector.load %arg4[%c29, %c0_312] : memref<56x128xf32, #tpu.memory_space<vmem>>, vector<1x128xf32>
    %cst_313 = arith.constant 5.000000e+00 : f32
    %627 = vector.broadcast %cst_313 : f32 to vector<1x128xf32>
    %628 = arith.cmpf oeq, %603, %627 : vector<1x128xf32>
    %629 = arith.select %628, %626, %625 : vector<1x128xi1>, vector<1x128xf32>
    %c30 = arith.constant 30 : index
    %c0_314 = arith.constant 0 : index
    %630 = vector.load %arg4[%c30, %c0_314] : memref<56x128xf32, #tpu.memory_space<vmem>>, vector<1x128xf32>
    %cst_315 = arith.constant 6.000000e+00 : f32
    %631 = vector.broadcast %cst_315 : f32 to vector<1x128xf32>
    %632 = arith.cmpf oeq, %603, %631 : vector<1x128xf32>
    %633 = arith.select %632, %630, %629 : vector<1x128xi1>, vector<1x128xf32>
    %c31 = arith.constant 31 : index
    %c0_316 = arith.constant 0 : index
    %634 = vector.load %arg4[%c31, %c0_316] : memref<56x128xf32, #tpu.memory_space<vmem>>, vector<1x128xf32>
    %cst_317 = arith.constant 7.000000e+00 : f32
    %635 = vector.broadcast %cst_317 : f32 to vector<1x128xf32>
    %636 = arith.cmpf oeq, %603, %635 : vector<1x128xf32>
    %637 = arith.select %636, %634, %633 : vector<1x128xi1>, vector<1x128xf32>
    %c3_318 = arith.constant 3 : index
    %c0_319 = arith.constant 0 : index
    %638 = vector.load %arg2[%c3_318, %c0_319] : memref<9x128xf32, #tpu.memory_space<vmem>>, vector<1x128xf32>
    tpu.vector_store %arg2[%c3_318, %c0_319], %637 {strides = array<i32>} : memref<9x128xf32, #tpu.memory_space<vmem>>, vector<1x128xf32>,
    %cst_320 = arith.constant 0.000000e+00 : f32
    %639 = vector.broadcast %cst_320 : f32 to vector<1x128xf32>
    %c16_321 = arith.constant 16 : index
    %c0_322 = arith.constant 0 : index
    %640 = vector.load %arg4[%c16_321, %c0_322] : memref<56x128xf32, #tpu.memory_space<vmem>>, vector<1x128xf32>
    %cst_323 = arith.constant 0.000000e+00 : f32
    %641 = vector.broadcast %cst_323 : f32 to vector<1x128xf32>
    %642 = arith.cmpf oeq, %637, %641 : vector<1x128xf32>
    %643 = arith.select %642, %640, %639 : vector<1x128xi1>, vector<1x128xf32>
    %c17 = arith.constant 17 : index
    %c0_324 = arith.constant 0 : index
    %644 = vector.load %arg4[%c17, %c0_324] : memref<56x128xf32, #tpu.memory_space<vmem>>, vector<1x128xf32>
    %cst_325 = arith.constant 1.000000e+00 : f32
    %645 = vector.broadcast %cst_325 : f32 to vector<1x128xf32>
    %646 = arith.cmpf oeq, %637, %645 : vector<1x128xf32>
    %647 = arith.select %646, %644, %643 : vector<1x128xi1>, vector<1x128xf32>
    %c18 = arith.constant 18 : index
    %c0_326 = arith.constant 0 : index
    %648 = vector.load %arg4[%c18, %c0_326] : memref<56x128xf32, #tpu.memory_space<vmem>>, vector<1x128xf32>
    %cst_327 = arith.constant 2.000000e+00 : f32
    %649 = vector.broadcast %cst_327 : f32 to vector<1x128xf32>
    %650 = arith.cmpf oeq, %637, %649 : vector<1x128xf32>
    %651 = arith.select %650, %648, %647 : vector<1x128xi1>, vector<1x128xf32>
    %c19 = arith.constant 19 : index
    %c0_328 = arith.constant 0 : index
    %652 = vector.load %arg4[%c19, %c0_328] : memref<56x128xf32, #tpu.memory_space<vmem>>, vector<1x128xf32>
    %cst_329 = arith.constant 3.000000e+00 : f32
    %653 = vector.broadcast %cst_329 : f32 to vector<1x128xf32>
    %654 = arith.cmpf oeq, %637, %653 : vector<1x128xf32>
    %655 = arith.select %654, %652, %651 : vector<1x128xi1>, vector<1x128xf32>
    %c20 = arith.constant 20 : index
    %c0_330 = arith.constant 0 : index
    %656 = vector.load %arg4[%c20, %c0_330] : memref<56x128xf32, #tpu.memory_space<vmem>>, vector<1x128xf32>
    %cst_331 = arith.constant 4.000000e+00 : f32
    %657 = vector.broadcast %cst_331 : f32 to vector<1x128xf32>
    %658 = arith.cmpf oeq, %637, %657 : vector<1x128xf32>
    %659 = arith.select %658, %656, %655 : vector<1x128xi1>, vector<1x128xf32>
    %c21 = arith.constant 21 : index
    %c0_332 = arith.constant 0 : index
    %660 = vector.load %arg4[%c21, %c0_332] : memref<56x128xf32, #tpu.memory_space<vmem>>, vector<1x128xf32>
    %cst_333 = arith.constant 5.000000e+00 : f32
    %661 = vector.broadcast %cst_333 : f32 to vector<1x128xf32>
    %662 = arith.cmpf oeq, %637, %661 : vector<1x128xf32>
    %663 = arith.select %662, %660, %659 : vector<1x128xi1>, vector<1x128xf32>
    %c22 = arith.constant 22 : index
    %c0_334 = arith.constant 0 : index
    %664 = vector.load %arg4[%c22, %c0_334] : memref<56x128xf32, #tpu.memory_space<vmem>>, vector<1x128xf32>
    %cst_335 = arith.constant 6.000000e+00 : f32
    %665 = vector.broadcast %cst_335 : f32 to vector<1x128xf32>
    %666 = arith.cmpf oeq, %637, %665 : vector<1x128xf32>
    %667 = arith.select %666, %664, %663 : vector<1x128xi1>, vector<1x128xf32>
    %c23 = arith.constant 23 : index
    %c0_336 = arith.constant 0 : index
    %668 = vector.load %arg4[%c23, %c0_336] : memref<56x128xf32, #tpu.memory_space<vmem>>, vector<1x128xf32>
    %cst_337 = arith.constant 7.000000e+00 : f32
    %669 = vector.broadcast %cst_337 : f32 to vector<1x128xf32>
    %670 = arith.cmpf oeq, %637, %669 : vector<1x128xf32>
    %671 = arith.select %670, %668, %667 : vector<1x128xi1>, vector<1x128xf32>
    %c2_338 = arith.constant 2 : index
    %c0_339 = arith.constant 0 : index
    %672 = vector.load %arg2[%c2_338, %c0_339] : memref<9x128xf32, #tpu.memory_space<vmem>>, vector<1x128xf32>
    tpu.vector_store %arg2[%c2_338, %c0_339], %671 {strides = array<i32>} : memref<9x128xf32, #tpu.memory_space<vmem>>, vector<1x128xf32>,
    %cst_340 = arith.constant 0.000000e+00 : f32
    %673 = vector.broadcast %cst_340 : f32 to vector<1x128xf32>
    %c8_341 = arith.constant 8 : index
    %c0_342 = arith.constant 0 : index
    %674 = vector.load %arg4[%c8_341, %c0_342] : memref<56x128xf32, #tpu.memory_space<vmem>>, vector<1x128xf32>
    %cst_343 = arith.constant 0.000000e+00 : f32
    %675 = vector.broadcast %cst_343 : f32 to vector<1x128xf32>
    %676 = arith.cmpf oeq, %671, %675 : vector<1x128xf32>
    %677 = arith.select %676, %674, %673 : vector<1x128xi1>, vector<1x128xf32>
    %c9 = arith.constant 9 : index
    %c0_344 = arith.constant 0 : index
    %678 = vector.load %arg4[%c9, %c0_344] : memref<56x128xf32, #tpu.memory_space<vmem>>, vector<1x128xf32>
    %cst_345 = arith.constant 1.000000e+00 : f32
    %679 = vector.broadcast %cst_345 : f32 to vector<1x128xf32>
    %680 = arith.cmpf oeq, %671, %679 : vector<1x128xf32>
    %681 = arith.select %680, %678, %677 : vector<1x128xi1>, vector<1x128xf32>
    %c10 = arith.constant 10 : index
    %c0_346 = arith.constant 0 : index
    %682 = vector.load %arg4[%c10, %c0_346] : memref<56x128xf32, #tpu.memory_space<vmem>>, vector<1x128xf32>
    %cst_347 = arith.constant 2.000000e+00 : f32
    %683 = vector.broadcast %cst_347 : f32 to vector<1x128xf32>
    %684 = arith.cmpf oeq, %671, %683 : vector<1x128xf32>
    %685 = arith.select %684, %682, %681 : vector<1x128xi1>, vector<1x128xf32>
    %c11 = arith.constant 11 : index
    %c0_348 = arith.constant 0 : index
    %686 = vector.load %arg4[%c11, %c0_348] : memref<56x128xf32, #tpu.memory_space<vmem>>, vector<1x128xf32>
    %cst_349 = arith.constant 3.000000e+00 : f32
    %687 = vector.broadcast %cst_349 : f32 to vector<1x128xf32>
    %688 = arith.cmpf oeq, %671, %687 : vector<1x128xf32>
    %689 = arith.select %688, %686, %685 : vector<1x128xi1>, vector<1x128xf32>
    %c12 = arith.constant 12 : index
    %c0_350 = arith.constant 0 : index
    %690 = vector.load %arg4[%c12, %c0_350] : memref<56x128xf32, #tpu.memory_space<vmem>>, vector<1x128xf32>
    %cst_351 = arith.constant 4.000000e+00 : f32
    %691 = vector.broadcast %cst_351 : f32 to vector<1x128xf32>
    %692 = arith.cmpf oeq, %671, %691 : vector<1x128xf32>
    %693 = arith.select %692, %690, %689 : vector<1x128xi1>, vector<1x128xf32>
    %c13 = arith.constant 13 : index
    %c0_352 = arith.constant 0 : index
    %694 = vector.load %arg4[%c13, %c0_352] : memref<56x128xf32, #tpu.memory_space<vmem>>, vector<1x128xf32>
    %cst_353 = arith.constant 5.000000e+00 : f32
    %695 = vector.broadcast %cst_353 : f32 to vector<1x128xf32>
    %696 = arith.cmpf oeq, %671, %695 : vector<1x128xf32>
    %697 = arith.select %696, %694, %693 : vector<1x128xi1>, vector<1x128xf32>
    %c14 = arith.constant 14 : index
    %c0_354 = arith.constant 0 : index
    %698 = vector.load %arg4[%c14, %c0_354] : memref<56x128xf32, #tpu.memory_space<vmem>>, vector<1x128xf32>
    %cst_355 = arith.constant 6.000000e+00 : f32
    %699 = vector.broadcast %cst_355 : f32 to vector<1x128xf32>
    %700 = arith.cmpf oeq, %671, %699 : vector<1x128xf32>
    %701 = arith.select %700, %698, %697 : vector<1x128xi1>, vector<1x128xf32>
    %c15 = arith.constant 15 : index
    %c0_356 = arith.constant 0 : index
    %702 = vector.load %arg4[%c15, %c0_356] : memref<56x128xf32, #tpu.memory_space<vmem>>, vector<1x128xf32>
    %cst_357 = arith.constant 7.000000e+00 : f32
    %703 = vector.broadcast %cst_357 : f32 to vector<1x128xf32>
    %704 = arith.cmpf oeq, %671, %703 : vector<1x128xf32>
    %705 = arith.select %704, %702, %701 : vector<1x128xi1>, vector<1x128xf32>
    %c1_358 = arith.constant 1 : index
    %c0_359 = arith.constant 0 : index
    %706 = vector.load %arg2[%c1_358, %c0_359] : memref<9x128xf32, #tpu.memory_space<vmem>>, vector<1x128xf32>
    tpu.vector_store %arg2[%c1_358, %c0_359], %705 {strides = array<i32>} : memref<9x128xf32, #tpu.memory_space<vmem>>, vector<1x128xf32>,
    %cst_360 = arith.constant 0.000000e+00 : f32
    %707 = vector.broadcast %cst_360 : f32 to vector<1x128xf32>
    %c0_361 = arith.constant 0 : index
    %c0_362 = arith.constant 0 : index
    %708 = vector.load %arg4[%c0_361, %c0_362] : memref<56x128xf32, #tpu.memory_space<vmem>>, vector<1x128xf32>
    %cst_363 = arith.constant 0.000000e+00 : f32
    %709 = vector.broadcast %cst_363 : f32 to vector<1x128xf32>
    %710 = arith.cmpf oeq, %705, %709 : vector<1x128xf32>
    %711 = arith.select %710, %708, %707 : vector<1x128xi1>, vector<1x128xf32>
    %c1_364 = arith.constant 1 : index
    %c0_365 = arith.constant 0 : index
    %712 = vector.load %arg4[%c1_364, %c0_365] : memref<56x128xf32, #tpu.memory_space<vmem>>, vector<1x128xf32>
    %cst_366 = arith.constant 1.000000e+00 : f32
    %713 = vector.broadcast %cst_366 : f32 to vector<1x128xf32>
    %714 = arith.cmpf oeq, %705, %713 : vector<1x128xf32>
    %715 = arith.select %714, %712, %711 : vector<1x128xi1>, vector<1x128xf32>
    %c2_367 = arith.constant 2 : index
    %c0_368 = arith.constant 0 : index
    %716 = vector.load %arg4[%c2_367, %c0_368] : memref<56x128xf32, #tpu.memory_space<vmem>>, vector<1x128xf32>
    %cst_369 = arith.constant 2.000000e+00 : f32
    %717 = vector.broadcast %cst_369 : f32 to vector<1x128xf32>
    %718 = arith.cmpf oeq, %705, %717 : vector<1x128xf32>
    %719 = arith.select %718, %716, %715 : vector<1x128xi1>, vector<1x128xf32>
    %c3_370 = arith.constant 3 : index
    %c0_371 = arith.constant 0 : index
    %720 = vector.load %arg4[%c3_370, %c0_371] : memref<56x128xf32, #tpu.memory_space<vmem>>, vector<1x128xf32>
    %cst_372 = arith.constant 3.000000e+00 : f32
    %721 = vector.broadcast %cst_372 : f32 to vector<1x128xf32>
    %722 = arith.cmpf oeq, %705, %721 : vector<1x128xf32>
    %723 = arith.select %722, %720, %719 : vector<1x128xi1>, vector<1x128xf32>
    %c4_373 = arith.constant 4 : index
    %c0_374 = arith.constant 0 : index
    %724 = vector.load %arg4[%c4_373, %c0_374] : memref<56x128xf32, #tpu.memory_space<vmem>>, vector<1x128xf32>
    %cst_375 = arith.constant 4.000000e+00 : f32
    %725 = vector.broadcast %cst_375 : f32 to vector<1x128xf32>
    %726 = arith.cmpf oeq, %705, %725 : vector<1x128xf32>
    %727 = arith.select %726, %724, %723 : vector<1x128xi1>, vector<1x128xf32>
    %c5_376 = arith.constant 5 : index
    %c0_377 = arith.constant 0 : index
    %728 = vector.load %arg4[%c5_376, %c0_377] : memref<56x128xf32, #tpu.memory_space<vmem>>, vector<1x128xf32>
    %cst_378 = arith.constant 5.000000e+00 : f32
    %729 = vector.broadcast %cst_378 : f32 to vector<1x128xf32>
    %730 = arith.cmpf oeq, %705, %729 : vector<1x128xf32>
    %731 = arith.select %730, %728, %727 : vector<1x128xi1>, vector<1x128xf32>
    %c6_379 = arith.constant 6 : index
    %c0_380 = arith.constant 0 : index
    %732 = vector.load %arg4[%c6_379, %c0_380] : memref<56x128xf32, #tpu.memory_space<vmem>>, vector<1x128xf32>
    %cst_381 = arith.constant 6.000000e+00 : f32
    %733 = vector.broadcast %cst_381 : f32 to vector<1x128xf32>
    %734 = arith.cmpf oeq, %705, %733 : vector<1x128xf32>
    %735 = arith.select %734, %732, %731 : vector<1x128xi1>, vector<1x128xf32>
    %c7_382 = arith.constant 7 : index
    %c0_383 = arith.constant 0 : index
    %736 = vector.load %arg4[%c7_382, %c0_383] : memref<56x128xf32, #tpu.memory_space<vmem>>, vector<1x128xf32>
    %cst_384 = arith.constant 7.000000e+00 : f32
    %737 = vector.broadcast %cst_384 : f32 to vector<1x128xf32>
    %738 = arith.cmpf oeq, %705, %737 : vector<1x128xf32>
    %739 = arith.select %738, %736, %735 : vector<1x128xi1>, vector<1x128xf32>
    %c0_385 = arith.constant 0 : index
    %c0_386 = arith.constant 0 : index
    %740 = vector.load %arg2[%c0_385, %c0_386] : memref<9x128xf32, #tpu.memory_space<vmem>>, vector<1x128xf32>
    tpu.vector_store %arg2[%c0_385, %c0_386], %739 {strides = array<i32>} : memref<9x128xf32, #tpu.memory_space<vmem>>, vector<1x128xf32>,
    %c8_387 = arith.constant 8 : index
    %c0_388 = arith.constant 0 : index
    %741 = vector.load %arg2[%c8_387, %c0_388] : memref<9x128xf32, #tpu.memory_space<vmem>>, vector<1x128xf32>
    tpu.vector_store %arg2[%c8_387, %c0_388], %501 {strides = array<i32>} : memref<9x128xf32, #tpu.memory_space<vmem>>, vector<1x128xf32>,
    return
  }
}

</mosaic_0001>

<llo_original>
// kernel: viterbi_decode_batch.1
$region0: #{viterbi_decode_batch.1}
  #allocation0 [shape = 'u32[]', space=smem, size = 0x4, offset = 0x4, fixed_abs, tag = 'smem constant byte address 0x4 - core index']
  #allocation1 [shape = 'u32[144,128]{1,0:T(1,128)}', space=vmem, size = 0x12000, scoped, tag = 'internal scratch']
  #allocation2 [shape = 'f32[8,128]{1,0:T(8,128)}', space=vmem, size = 0x1000, scoped, tag = 'scratch operand']
  #allocation3 [shape = 'f32[56,128]{1,0:T(8,128)}', space=vmem, size = 0x7000, scoped, tag = 'scratch operand']
  %s0 = inlined_call_operand.vmem [shape: f32[64,128], index: 0, kind: input, shape index: {}]
  %s1 = inlined_call_operand.vmem [shape: f32[8,8], index: 1, kind: input, shape index: {}]
  %s2 = inlined_call_operand.vmem [shape: f32[9,128], index: 2, kind: output, shape index: {}]
  %s3 = sld [smem:[#allocation0]]
  $region18: #{viterbi_decode_batch.1} parent=0
    _
  %s5 = ssub.s32 1, %s3
  %s6 = scalar_select 0, %s5, %s3
  // Predicated region
  $region2: #{viterbi_decode_batch.1} parent=0 // pred_check
    _
  $region3: #{viterbi_decode_batch.1} parent=0 // pred_check_branch
    %8 = sbr.rel (0) target = $region5
  $region4: #{viterbi_decode_batch.1} parent=0 // pred_region
    _
  $region5: #{viterbi_decode_batch.1} parent=0 // pred_fallthru
    _
  // Predicated region
  $region6: #{viterbi_decode_batch.1} parent=0 // pred_check
    _
  $region7: #{viterbi_decode_batch.1} parent=0 // pred_check_branch
    %10 = sbr.rel (0) target = $region9
  $region8: #{viterbi_decode_batch.1} parent=0 // pred_region
    _
  $region9: #{viterbi_decode_batch.1} parent=0 // pred_fallthru
    _
  %v11 = vld [vmem:[%s1] sm:$0xff]
  %v12 = vld [vmem:[%s0] sm:$0xff]
  %13 = vst [vmem:[#allocation2] sm:$0xff] %v12
  %v14 = vld [vmem:[#allocation2] sm:$0x1]
  %v15 = vlaneseq
  %v16 = vshrl.u32 %v15, 7
  %v17 = vsub.s32 0, %v16
  %v18 = vrot.slane %v14, %v17
  %20 = vset.pattern.permute.xlu0 0
  %21 = vperm.xlu0 %20, %v11
  %v22 = vpop.permute.xlu0 %21
  %v24 = vadd.f32 %v18, %v22
  %v25 = vld [vmem:[#allocation2 + $0x1] sm:$0x1]
  %v26 = vlaneseq
  %v27 = vshrl.u32 %v26, 7
  %v28 = vsub.s32 0, %v27
  %v29 = vrot.slane %v25, %v28
  %30 = vset.pattern.permute.xlu0 1
  %31 = vperm.xlu0 %30, %v11
  %v32 = vpop.permute.xlu0 %31
  %v34 = vadd.f32 %v29, %v32
  %vm35 = vcmp.gt.f32.partialorder %v34, %v24
  %v36 = vsel %vm35, 1.0, 0.0
  %v37 = vsel %vm35, %v34, %v24
  %v38 = vld [vmem:[#allocation2 + $0x2] sm:$0x1]
  %v39 = vlaneseq
  %v40 = vshrl.u32 %v39, 7
  %v41 = vsub.s32 0, %v40
  %v42 = vrot.slane %v38, %v41
  %43 = vset.pattern.permute.xlu0 2
  %44 = vperm.xlu0 %43, %v11
  %v45 = vpop.permute.xlu0 %44
  %v47 = vadd.f32 %v42, %v45
  %vm48 = vcmp.gt.f32.partialorder %v47, %v37
  %v49 = vsel %vm48, 2.0, %v36
  %v50 = vsel %vm48, %v47, %v37
  %v51 = vld [vmem:[#allocation2 + $0x3] sm:$0x1]
  %v52 = vlaneseq
  %v53 = vshrl.u32 %v52, 7
  %v54 = vsub.s32 0, %v53
  %v55 = vrot.slane %v51, %v54
  %56 = vset.pattern.permute.xlu0 3
  %57 = vperm.xlu0 %56, %v11
  %v58 = vpop.permute.xlu0 %57
  %v60 = vadd.f32 %v55, %v58
  %vm61 = vcmp.gt.f32.partialorder %v60, %v50
  %v62 = vsel %vm61, 3.0, %v49
  %v63 = vsel %vm61, %v60, %v50
  %v64 = vld [vmem:[#allocation2 + $0x4] sm:$0x1]
  %v65 = vlaneseq
  %v66 = vshrl.u32 %v65, 7
  %v67 = vsub.s32 0, %v66
  %v68 = vrot.slane %v64, %v67
  %69 = vset.pattern.permute.xlu0 4
  %70 = vperm.xlu0 %69, %v11
  %v71 = vpop.permute.xlu0 %70
  %v73 = vadd.f32 %v68, %v71
  %vm74 = vcmp.gt.f32.partialorder %v73, %v63
  %v75 = vsel %vm74, 4.0, %v62
  %v76 = vsel %vm74, %v73, %v63
  %v77 = vld [vmem:[#allocation2 + $0x5] sm:$0x1]
  %v78 = vlaneseq
  %v79 = vshrl.u32 %v78, 7
  %v80 = vsub.s32 0, %v79
  %v81 = vrot.slane %v77, %v80
  %82 = vset.pattern.permute.xlu0 5
  %83 = vperm.xlu0 %82, %v11
  %v84 = vpop.permute.xlu0 %83
  %v86 = vadd.f32 %v81, %v84
  %vm87 = vcmp.gt.f32.partialorder %v86, %v76
  %v88 = vsel %vm87, 5.0, %v75
  %v89 = vsel %vm87, %v86, %v76
  %v90 = vld [vmem:[#allocation2 + $0x6] sm:$0x1]
  %v91 = vlaneseq
  %v92 = vshrl.u32 %v91, 7
  %v93 = vsub.s32 0, %v92
  %v94 = vrot.slane %v90, %v93
  %95 = vset.pattern.permute.xlu0 6
  %96 = vperm.xlu0 %95, %v11
  %v97 = vpop.permute.xlu0 %96
  %v99 = vadd.f32 %v94, %v97
  %vm100 = vcmp.gt.f32.partialorder %v99, %v89
  %v101 = vsel %vm100, 6.0, %v88
  %v102 = vsel %vm100, %v99, %v89
  %v103 = vld [vmem:[#allocation2 + $0x7] sm:$0x1]
  %v104 = vlaneseq
  %v105 = vshrl.u32 %v104, 7
  %v106 = vsub.s32 0, %v105
  %v107 = vrot.slane %v103, %v106
  %108 = vset.pattern.permute.xlu0 7
  %109 = vperm.xlu0 %108, %v11
  %v110 = vpop.permute.xlu0 %109
  %v112 = vadd.f32 %v107, %v110
  %vm113 = vcmp.gt.f32.partialorder %v112, %v102
  %v114 = vsel %vm113, 7.0, %v101
  %v115 = vsel %vm113, %v112, %v102
  %116 = vst [vmem:[#allocation3] sm:$0xff] %v114
  %v117 = vld [vmem:[%s0 + $0x8] sm:$0xff]
  %v118 = vadd.f32 %v115, %v117
  %119 = vst [vmem:[#allocation2] sm:$0xff] %v118
  %v120 = vld [vmem:[#allocation2] sm:$0x1]
  %v121 = vlaneseq
  %v122 = vshrl.u32 %v121, 7
  %v123 = vsub.s32 0, %v122
  %v124 = vrot.slane %v120, %v123
  %v125 = vadd.f32 %v124, %v22
  %v126 = vld [vmem:[#allocation2 + $0x1] sm:$0x1]
  %v127 = vlaneseq
  %v128 = vshrl.u32 %v127, 7
  %v129 = vsub.s32 0, %v128
  %v130 = vrot.slane %v126, %v129
  %v131 = vadd.f32 %v130, %v32
  %vm132 = vcmp.gt.f32.partialorder %v131, %v125
  %v133 = vsel %vm132, 1.0, 0.0
  %v134 = vsel %vm132, %v131, %v125
  %v135 = vld [vmem:[#allocation2 + $0x2] sm:$0x1]
  %v136 = vlaneseq
  %v137 = vshrl.u32 %v136, 7
  %v138 = vsub.s32 0, %v137
  %v139 = vrot.slane %v135, %v138
  %v140 = vadd.f32 %v139, %v45
  %vm141 = vcmp.gt.f32.partialorder %v140, %v134
  %v142 = vsel %vm141, 2.0, %v133
  %v143 = vsel %vm141, %v140, %v134
  %v144 = vld [vmem:[#allocation2 + $0x3] sm:$0x1]
  %v145 = vlaneseq
  %v146 = vshrl.u32 %v145, 7
  %v147 = vsub.s32 0, %v146
  %v148 = vrot.slane %v144, %v147
  %v149 = vadd.f32 %v148, %v58
  %vm150 = vcmp.gt.f32.partialorder %v149, %v143
  %v151 = vsel %vm150, 3.0, %v142
  %v152 = vsel %vm150, %v149, %v143
  %v153 = vld [vmem:[#allocation2 + $0x4] sm:$0x1]
  %v154 = vlaneseq
  %v155 = vshrl.u32 %v154, 7
  %v156 = vsub.s32 0, %v155
  %v157 = vrot.slane %v153, %v156
  %v158 = vadd.f32 %v157, %v71
  %vm159 = vcmp.gt.f32.partialorder %v158, %v152
  %v160 = vsel %vm159, 4.0, %v151
  %v161 = vsel %vm159, %v158, %v152
  %v162 = vld [vmem:[#allocation2 + $0x5] sm:$0x1]
  %v163 = vlaneseq
  %v164 = vshrl.u32 %v163, 7
  %v165 = vsub.s32 0, %v164
  %v166 = vrot.slane %v162, %v165
  %v167 = vadd.f32 %v166, %v84
  %vm168 = vcmp.gt.f32.partialorder %v167, %v161
  %v169 = vsel %vm168, 5.0, %v160
  %v170 = vsel %vm168, %v167, %v161
  %v171 = vld [vmem:[#allocation2 + $0x6] sm:$0x1]
  %v172 = vlaneseq
  %v173 = vshrl.u32 %v172, 7
  %v174 = vsub.s32 0, %v173
  %v175 = vrot.slane %v171, %v174
  %v176 = vadd.f32 %v175, %v97
  %vm177 = vcmp.gt.f32.partialorder %v176, %v170
  %v178 = vsel %vm177, 6.0, %v169
  %v179 = vsel %vm177, %v176, %v170
  %v180 = vld [vmem:[#allocation2 + $0x7] sm:$0x1]
  %v181 = vlaneseq
  %v182 = vshrl.u32 %v181, 7
  %v183 = vsub.s32 0, %v182
  %v184 = vrot.slane %v180, %v183
  %v185 = vadd.f32 %v184, %v110
  %vm186 = vcmp.gt.f32.partialorder %v185, %v179
  %v187 = vsel %vm186, 7.0, %v178
  %v188 = vsel %vm186, %v185, %v179
  %189 = vst [vmem:[#allocation3 + $0x8] sm:$0xff] %v187
  %v190 = vld [vmem:[%s0 + $0x10] sm:$0xff]
  %v191 = vadd.f32 %v188, %v190
  %192 = vst [vmem:[#allocation2] sm:$0xff] %v191
  %v193 = vld [vmem:[#allocation2] sm:$0x1]
  %v194 = vlaneseq
  %v195 = vshrl.u32 %v194, 7
  %v196 = vsub.s32 0, %v195
  %v197 = vrot.slane %v193, %v196
  %v198 = vadd.f32 %v197, %v22
  %v199 = vld [vmem:[#allocation2 + $0x1] sm:$0x1]
  %v200 = vlaneseq
  %v201 = vshrl.u32 %v200, 7
  %v202 = vsub.s32 0, %v201
  %v203 = vrot.slane %v199, %v202
  %v204 = vadd.f32 %v203, %v32
  %vm205 = vcmp.gt.f32.partialorder %v204, %v198
  %v206 = vsel %vm205, 1.0, 0.0
  %v207 = vsel %vm205, %v204, %v198
  %v208 = vld [vmem:[#allocation2 + $0x2] sm:$0x1]
  %v209 = vlaneseq
  %v210 = vshrl.u32 %v209, 7
  %v211 = vsub.s32 0, %v210
  %v212 = vrot.slane %v208, %v211
  %v213 = vadd.f32 %v212, %v45
  %vm214 = vcmp.gt.f32.partialorder %v213, %v207
  %v215 = vsel %vm214, 2.0, %v206
  %v216 = vsel %vm214, %v213, %v207
  %v217 = vld [vmem:[#allocation2 + $0x3] sm:$0x1]
  %v218 = vlaneseq
  %v219 = vshrl.u32 %v218, 7
  %v220 = vsub.s32 0, %v219
  %v221 = vrot.slane %v217, %v220
  %v222 = vadd.f32 %v221, %v58
  %vm223 = vcmp.gt.f32.partialorder %v222, %v216
  %v224 = vsel %vm223, 3.0, %v215
  %v225 = vsel %vm223, %v222, %v216
  %v226 = vld [vmem:[#allocation2 + $0x4] sm:$0x1]
  %v227 = vlaneseq
  %v228 = vshrl.u32 %v227, 7
  %v229 = vsub.s32 0, %v228
  %v230 = vrot.slane %v226, %v229
  %v231 = vadd.f32 %v230, %v71
  %vm232 = vcmp.gt.f32.partialorder %v231, %v225
  %v233 = vsel %vm232, 4.0, %v224
  %v234 = vsel %vm232, %v231, %v225
  %v235 = vld [vmem:[#allocation2 + $0x5] sm:$0x1]
  %v236 = vlaneseq
  %v237 = vshrl.u32 %v236, 7
  %v238 = vsub.s32 0, %v237
  %v239 = vrot.slane %v235, %v238
  %v240 = vadd.f32 %v239, %v84
  %vm241 = vcmp.gt.f32.partialorder %v240, %v234
  %v242 = vsel %vm241, 5.0, %v233
  %v243 = vsel %vm241, %v240, %v234
  %v244 = vld [vmem:[#allocation2 + $0x6] sm:$0x1]
  %v245 = vlaneseq
  %v246 = vshrl.u32 %v245, 7
  %v247 = vsub.s32 0, %v246
  %v248 = vrot.slane %v244, %v247
  %v249 = vadd.f32 %v248, %v97
  %vm250 = vcmp.gt.f32.partialorder %v249, %v243
  %v251 = vsel %vm250, 6.0, %v242
  %v252 = vsel %vm250, %v249, %v243
  %v253 = vld [vmem:[#allocation2 + $0x7] sm:$0x1]
  %v254 = vlaneseq
  %v255 = vshrl.u32 %v254, 7
  %v256 = vsub.s32 0, %v255
  %v257 = vrot.slane %v253, %v256
  %v258 = vadd.f32 %v257, %v110
  %vm259 = vcmp.gt.f32.partialorder %v258, %v252
  %v260 = vsel %vm259, 7.0, %v251
  %v261 = vsel %vm259, %v258, %v252
  %262 = vst [vmem:[#allocation3 + $0x10] sm:$0xff] %v260
  %v263 = vld [vmem:[%s0 + $0x18] sm:$0xff]
  %v264 = vadd.f32 %v261, %v263
  %265 = vst [vmem:[#allocation2] sm:$0xff] %v264
  %v266 = vld [vmem:[#allocation2] sm:$0x1]
  %v267 = vlaneseq
  %v268 = vshrl.u32 %v267, 7
  %v269 = vsub.s32 0, %v268
  %v270 = vrot.slane %v266, %v269
  %v271 = vadd.f32 %v270, %v22
  %v272 = vld [vmem:[#allocation2 + $0x1] sm:$0x1]
  %v273 = vlaneseq
  %v274 = vshrl.u32 %v273, 7
  %v275 = vsub.s32 0, %v274
  %v276 = vrot.slane %v272, %v275
  %v277 = vadd.f32 %v276, %v32
  %vm278 = vcmp.gt.f32.partialorder %v277, %v271
  %v279 = vsel %vm278, 1.0, 0.0
  %v280 = vsel %vm278, %v277, %v271
  %v281 = vld [vmem:[#allocation2 + $0x2] sm:$0x1]
  %v282 = vlaneseq
  %v283 = vshrl.u32 %v282, 7
  %v284 = vsub.s32 0, %v283
  %v285 = vrot.slane %v281, %v284
  %v286 = vadd.f32 %v285, %v45
  %vm287 = vcmp.gt.f32.partialorder %v286, %v280
  %v288 = vsel %vm287, 2.0, %v279
  %v289 = vsel %vm287, %v286, %v280
  %v290 = vld [vmem:[#allocation2 + $0x3] sm:$0x1]
  %v291 = vlaneseq
  %v292 = vshrl.u32 %v291, 7
  %v293 = vsub.s32 0, %v292
  %v294 = vrot.slane %v290, %v293
  %v295 = vadd.f32 %v294, %v58
  %vm296 = vcmp.gt.f32.partialorder %v295, %v289
  %v297 = vsel %vm296, 3.0, %v288
  %v298 = vsel %vm296, %v295, %v289
  %v299 = vld [vmem:[#allocation2 + $0x4] sm:$0x1]
  %v300 = vlaneseq
  %v301 = vshrl.u32 %v300, 7
  %v302 = vsub.s32 0, %v301
  %v303 = vrot.slane %v299, %v302
  %v304 = vadd.f32 %v303, %v71
  %vm305 = vcmp.gt.f32.partialorder %v304, %v298
  %v306 = vsel %vm305, 4.0, %v297
  %v307 = vsel %vm305, %v304, %v298
  %v308 = vld [vmem:[#allocation2 + $0x5] sm:$0x1]
  %v309 = vlaneseq
  %v310 = vshrl.u32 %v309, 7
  %v311 = vsub.s32 0, %v310
  %v312 = vrot.slane %v308, %v311
  %v313 = vadd.f32 %v312, %v84
  %vm314 = vcmp.gt.f32.partialorder %v313, %v307
  %v315 = vsel %vm314, 5.0, %v306
  %v316 = vsel %vm314, %v313, %v307
  %v317 = vld [vmem:[#allocation2 + $0x6] sm:$0x1]
  %v318 = vlaneseq
  %v319 = vshrl.u32 %v318, 7
  %v320 = vsub.s32 0, %v319
  %v321 = vrot.slane %v317, %v320
  %v322 = vadd.f32 %v321, %v97
  %vm323 = vcmp.gt.f32.partialorder %v322, %v316
  %v324 = vsel %vm323, 6.0, %v315
  %v325 = vsel %vm323, %v322, %v316
  %v326 = vld [vmem:[#allocation2 + $0x7] sm:$0x1]
  %v327 = vlaneseq
  %v328 = vshrl.u32 %v327, 7
  %v329 = vsub.s32 0, %v328
  %v330 = vrot.slane %v326, %v329
  %v331 = vadd.f32 %v330, %v110
  %vm332 = vcmp.gt.f32.partialorder %v331, %v325
  %v333 = vsel %vm332, 7.0, %v324
  %v334 = vsel %vm332, %v331, %v325
  %335 = vst [vmem:[#allocation3 + $0x18] sm:$0xff] %v333
  %v336 = vld [vmem:[%s0 + $0x20] sm:$0xff]
  %v337 = vadd.f32 %v334, %v336
  %338 = vst [vmem:[#allocation2] sm:$0xff] %v337
  %v339 = vld [vmem:[#allocation2] sm:$0x1]
  %v340 = vlaneseq
  %v341 = vshrl.u32 %v340, 7
  %v342 = vsub.s32 0, %v341
  %v343 = vrot.slane %v339, %v342
  %v344 = vadd.f32 %v343, %v22
  %v345 = vld [vmem:[#allocation2 + $0x1] sm:$0x1]
  %v346 = vlaneseq
  %v347 = vshrl.u32 %v346, 7
  %v348 = vsub.s32 0, %v347
  %v349 = vrot.slane %v345, %v348
  %v350 = vadd.f32 %v349, %v32
  %vm351 = vcmp.gt.f32.partialorder %v350, %v344
  %v352 = vsel %vm351, 1.0, 0.0
  %v353 = vsel %vm351, %v350, %v344
  %v354 = vld [vmem:[#allocation2 + $0x2] sm:$0x1]
  %v355 = vlaneseq
  %v356 = vshrl.u32 %v355, 7
  %v357 = vsub.s32 0, %v356
  %v358 = vrot.slane %v354, %v357
  %v359 = vadd.f32 %v358, %v45
  %vm360 = vcmp.gt.f32.partialorder %v359, %v353
  %v361 = vsel %vm360, 2.0, %v352
  %v362 = vsel %vm360, %v359, %v353
  %v363 = vld [vmem:[#allocation2 + $0x3] sm:$0x1]
  %v364 = vlaneseq
  %v365 = vshrl.u32 %v364, 7
  %v366 = vsub.s32 0, %v365
  %v367 = vrot.slane %v363, %v366
  %v368 = vadd.f32 %v367, %v58
  %vm369 = vcmp.gt.f32.partialorder %v368, %v362
  %v370 = vsel %vm369, 3.0, %v361
  %v371 = vsel %vm369, %v368, %v362
  %v372 = vld [vmem:[#allocation2 + $0x4] sm:$0x1]
  %v373 = vlaneseq
  %v374 = vshrl.u32 %v373, 7
  %v375 = vsub.s32 0, %v374
  %v376 = vrot.slane %v372, %v375
  %v377 = vadd.f32 %v376, %v71
  %vm378 = vcmp.gt.f32.partialorder %v377, %v371
  %v379 = vsel %vm378, 4.0, %v370
  %v380 = vsel %vm378, %v377, %v371
  %v381 = vld [vmem:[#allocation2 + $0x5] sm:$0x1]
  %v382 = vlaneseq
  %v383 = vshrl.u32 %v382, 7
  %v384 = vsub.s32 0, %v383
  %v385 = vrot.slane %v381, %v384
  %v386 = vadd.f32 %v385, %v84
  %vm387 = vcmp.gt.f32.partialorder %v386, %v380
  %v388 = vsel %vm387, 5.0, %v379
  %v389 = vsel %vm387, %v386, %v380
  %v390 = vld [vmem:[#allocation2 + $0x6] sm:$0x1]
  %v391 = vlaneseq
  %v392 = vshrl.u32 %v391, 7
  %v393 = vsub.s32 0, %v392
  %v394 = vrot.slane %v390, %v393
  %v395 = vadd.f32 %v394, %v97
  %vm396 = vcmp.gt.f32.partialorder %v395, %v389
  %v397 = vsel %vm396, 6.0, %v388
  %v398 = vsel %vm396, %v395, %v389
  %v399 = vld [vmem:[#allocation2 + $0x7] sm:$0x1]
  %v400 = vlaneseq
  %v401 = vshrl.u32 %v400, 7
  %v402 = vsub.s32 0, %v401
  %v403 = vrot.slane %v399, %v402
  %v404 = vadd.f32 %v403, %v110
  %vm405 = vcmp.gt.f32.partialorder %v404, %v398
  %v406 = vsel %vm405, 7.0, %v397
  %v407 = vsel %vm405, %v404, %v398
  %408 = vst [vmem:[#allocation3 + $0x20] sm:$0xff] %v406
  %v409 = vld [vmem:[%s0 + $0x28] sm:$0xff]
  %v410 = vadd.f32 %v407, %v409
  %411 = vst [vmem:[#allocation2] sm:$0xff] %v410
  %v412 = vld [vmem:[#allocation2] sm:$0x1]
  %v413 = vlaneseq
  %v414 = vshrl.u32 %v413, 7
  %v415 = vsub.s32 0, %v414
  %v416 = vrot.slane %v412, %v415
  %v417 = vadd.f32 %v416, %v22
  %v418 = vld [vmem:[#allocation2 + $0x1] sm:$0x1]
  %v419 = vlaneseq
  %v420 = vshrl.u32 %v419, 7
  %v421 = vsub.s32 0, %v420
  %v422 = vrot.slane %v418, %v421
  %v423 = vadd.f32 %v422, %v32
  %vm424 = vcmp.gt.f32.partialorder %v423, %v417
  %v425 = vsel %vm424, 1.0, 0.0
  %v426 = vsel %vm424, %v423, %v417
  %v427 = vld [vmem:[#allocation2 + $0x2] sm:$0x1]
  %v428 = vlaneseq
  %v429 = vshrl.u32 %v428, 7
  %v430 = vsub.s32 0, %v429
  %v431 = vrot.slane %v427, %v430
  %v432 = vadd.f32 %v431, %v45
  %vm433 = vcmp.gt.f32.partialorder %v432, %v426
  %v434 = vsel %vm433, 2.0, %v425
  %v435 = vsel %vm433, %v432, %v426
  %v436 = vld [vmem:[#allocation2 + $0x3] sm:$0x1]
  %v437 = vlaneseq
  %v438 = vshrl.u32 %v437, 7
  %v439 = vsub.s32 0, %v438
  %v440 = vrot.slane %v436, %v439
  %v441 = vadd.f32 %v440, %v58
  %vm442 = vcmp.gt.f32.partialorder %v441, %v435
  %v443 = vsel %vm442, 3.0, %v434
  %v444 = vsel %vm442, %v441, %v435
  %v445 = vld [vmem:[#allocation2 + $0x4] sm:$0x1]
  %v446 = vlaneseq
  %v447 = vshrl.u32 %v446, 7
  %v448 = vsub.s32 0, %v447
  %v449 = vrot.slane %v445, %v448
  %v450 = vadd.f32 %v449, %v71
  %vm451 = vcmp.gt.f32.partialorder %v450, %v444
  %v452 = vsel %vm451, 4.0, %v443
  %v453 = vsel %vm451, %v450, %v444
  %v454 = vld [vmem:[#allocation2 + $0x5] sm:$0x1]
  %v455 = vlaneseq
  %v456 = vshrl.u32 %v455, 7
  %v457 = vsub.s32 0, %v456
  %v458 = vrot.slane %v454, %v457
  %v459 = vadd.f32 %v458, %v84
  %vm460 = vcmp.gt.f32.partialorder %v459, %v453
  %v461 = vsel %vm460, 5.0, %v452
  %v462 = vsel %vm460, %v459, %v453
  %v463 = vld [vmem:[#allocation2 + $0x6] sm:$0x1]
  %v464 = vlaneseq
  %v465 = vshrl.u32 %v464, 7
  %v466 = vsub.s32 0, %v465
  %v467 = vrot.slane %v463, %v466
  %v468 = vadd.f32 %v467, %v97
  %vm469 = vcmp.gt.f32.partialorder %v468, %v462
  %v470 = vsel %vm469, 6.0, %v461
  %v471 = vsel %vm469, %v468, %v462
  %v472 = vld [vmem:[#allocation2 + $0x7] sm:$0x1]
  %v473 = vlaneseq
  %v474 = vshrl.u32 %v473, 7
  %v475 = vsub.s32 0, %v474
  %v476 = vrot.slane %v472, %v475
  %v477 = vadd.f32 %v476, %v110
  %vm478 = vcmp.gt.f32.partialorder %v477, %v471
  %v479 = vsel %vm478, 7.0, %v470
  %v480 = vsel %vm478, %v477, %v471
  %481 = vst [vmem:[#allocation3 + $0x28] sm:$0xff] %v479
  %v482 = vld [vmem:[%s0 + $0x30] sm:$0xff]
  %v483 = vadd.f32 %v480, %v482
  %484 = vst [vmem:[#allocation2] sm:$0xff] %v483
  %v485 = vld [vmem:[#allocation2] sm:$0x1]
  %v486 = vlaneseq
  %v487 = vshrl.u32 %v486, 7
  %v488 = vsub.s32 0, %v487
  %v489 = vrot.slane %v485, %v488
  %v490 = vadd.f32 %v489, %v22
  %v491 = vld [vmem:[#allocation2 + $0x1] sm:$0x1]
  %v492 = vlaneseq
  %v493 = vshrl.u32 %v492, 7
  %v494 = vsub.s32 0, %v493
  %v495 = vrot.slane %v491, %v494
  %v496 = vadd.f32 %v495, %v32
  %vm497 = vcmp.gt.f32.partialorder %v496, %v490
  %v498 = vsel %vm497, 1.0, 0.0
  %v499 = vsel %vm497, %v496, %v490
  %v500 = vld [vmem:[#allocation2 + $0x2] sm:$0x1]
  %v501 = vlaneseq
  %v502 = vshrl.u32 %v501, 7
  %v503 = vsub.s32 0, %v502
  %v504 = vrot.slane %v500, %v503
  %v505 = vadd.f32 %v504, %v45
  %vm506 = vcmp.gt.f32.partialorder %v505, %v499
  %v507 = vsel %vm506, 2.0, %v498
  %v508 = vsel %vm506, %v505, %v499
  %v509 = vld [vmem:[#allocation2 + $0x3] sm:$0x1]
  %v510 = vlaneseq
  %v511 = vshrl.u32 %v510, 7
  %v512 = vsub.s32 0, %v511
  %v513 = vrot.slane %v509, %v512
  %v514 = vadd.f32 %v513, %v58
  %vm515 = vcmp.gt.f32.partialorder %v514, %v508
  %v516 = vsel %vm515, 3.0, %v507
  %v517 = vsel %vm515, %v514, %v508
  %v518 = vld [vmem:[#allocation2 + $0x4] sm:$0x1]
  %v519 = vlaneseq
  %v520 = vshrl.u32 %v519, 7
  %v521 = vsub.s32 0, %v520
  %v522 = vrot.slane %v518, %v521
  %v523 = vadd.f32 %v522, %v71
  %vm524 = vcmp.gt.f32.partialorder %v523, %v517
  %v525 = vsel %vm524, 4.0, %v516
  %v526 = vsel %vm524, %v523, %v517
  %v527 = vld [vmem:[#allocation2 + $0x5] sm:$0x1]
  %v528 = vlaneseq
  %v529 = vshrl.u32 %v528, 7
  %v530 = vsub.s32 0, %v529
  %v531 = vrot.slane %v527, %v530
  %v532 = vadd.f32 %v531, %v84
  %vm533 = vcmp.gt.f32.partialorder %v532, %v526
  %v534 = vsel %vm533, 5.0, %v525
  %v535 = vsel %vm533, %v532, %v526
  %v536 = vld [vmem:[#allocation2 + $0x6] sm:$0x1]
  %v537 = vlaneseq
  %v538 = vshrl.u32 %v537, 7
  %v539 = vsub.s32 0, %v538
  %v540 = vrot.slane %v536, %v539
  %v541 = vadd.f32 %v540, %v97
  %vm542 = vcmp.gt.f32.partialorder %v541, %v535
  %v543 = vsel %vm542, 6.0, %v534
  %v544 = vsel %vm542, %v541, %v535
  %v545 = vld [vmem:[#allocation2 + $0x7] sm:$0x1]
  %v546 = vlaneseq
  %v547 = vshrl.u32 %v546, 7
  %v548 = vsub.s32 0, %v547
  %v549 = vrot.slane %v545, %v548
  %v550 = vadd.f32 %v549, %v110
  %vm551 = vcmp.gt.f32.partialorder %v550, %v544
  %v552 = vsel %vm551, 7.0, %v543
  %v553 = vsel %vm551, %v550, %v544
  %554 = vst [vmem:[#allocation3 + $0x30] sm:$0xff] %v552
  %v555 = vld [vmem:[%s0 + $0x38] sm:$0xff]
  %v556 = vadd.f32 %v553, %v555
  %557 = vst [vmem:[#allocation2] sm:$0xff] %v556
  %v558 = vld [vmem:[#allocation2] sm:$0x1]
  %v559 = vld [vmem:[#allocation2 + $0x1] sm:$0x1]
  %vm560 = vcmp.gt.f32.partialorder %v559, %v558
  %v561 = vsel %vm560, 1.0, 0.0
  %v562 = vsel %vm560, %v559, %v558
  %v563 = vld [vmem:[#allocation2 + $0x2] sm:$0x1]
  %vm564 = vcmp.gt.f32.partialorder %v563, %v562
  %v565 = vsel %vm564, 2.0, %v561
  %v566 = vsel %vm564, %v563, %v562
  %v567 = vld [vmem:[#allocation2 + $0x3] sm:$0x1]
  %vm568 = vcmp.gt.f32.partialorder %v567, %v566
  %v569 = vsel %vm568, 3.0, %v565
  %v570 = vsel %vm568, %v567, %v566
  %v571 = vld [vmem:[#allocation2 + $0x4] sm:$0x1]
  %vm572 = vcmp.gt.f32.partialorder %v571, %v570
  %v573 = vsel %vm572, 4.0, %v569
  %v574 = vsel %vm572, %v571, %v570
  %v575 = vld [vmem:[#allocation2 + $0x5] sm:$0x1]
  %vm576 = vcmp.gt.f32.partialorder %v575, %v574
  %v577 = vsel %vm576, 5.0, %v573
  %v578 = vsel %vm576, %v575, %v574
  %v579 = vld [vmem:[#allocation2 + $0x6] sm:$0x1]
  %vm580 = vcmp.gt.f32.partialorder %v579, %v578
  %v581 = vsel %vm580, 6.0, %v577
  %v582 = vsel %vm580, %v579, %v578
  %v583 = vld [vmem:[#allocation2 + $0x7] sm:$0x1]
  %vm584 = vcmp.gt.f32.partialorder %v583, %v582
  %v585 = vsel %vm584, 7.0, %v581
  %v586 = vsel %vm584, %v583, %v582
  %587 = vst [vmem:[%s2 + $0x7] sm:$0x1] %v585
  %v588 = vld [vmem:[#allocation3 + $0x30] sm:$0x1]
  %vm589 = vcmp.eq.f32.partialorder %v585, 0.0
  %v590 = vsel %vm589, %v588, 0.0
  %v591 = vld [vmem:[#allocation3 + $0x31] sm:$0x1]
  %vm592 = vcmp.eq.f32.partialorder %v585, 1.0
  %v593 = vsel %vm592, %v591, %v590
  %v594 = vld [vmem:[#allocation3 + $0x32] sm:$0x1]
  %vm595 = vcmp.eq.f32.partialorder %v585, 2.0
  %v596 = vsel %vm595, %v594, %v593
  %v597 = vld [vmem:[#allocation3 + $0x33] sm:$0x1]
  %vm598 = vcmp.eq.f32.partialorder %v585, 3.0
  %v599 = vsel %vm598, %v597, %v596
  %v600 = vld [vmem:[#allocation3 + $0x34] sm:$0x1]
  %vm601 = vcmp.eq.f32.partialorder %v585, 4.0
  %v602 = vsel %vm601, %v600, %v599
  %v603 = vld [vmem:[#allocation3 + $0x35] sm:$0x1]
  %vm604 = vcmp.eq.f32.partialorder %v585, 5.0
  %v605 = vsel %vm604, %v603, %v602
  %v606 = vld [vmem:[#allocation3 + $0x36] sm:$0x1]
  %vm607 = vcmp.eq.f32.partialorder %v585, 6.0
  %v608 = vsel %vm607, %v606, %v605
  %v609 = vld [vmem:[#allocation3 + $0x37] sm:$0x1]
  %vm610 = vcmp.eq.f32.partialorder %v585, 7.0
  %v611 = vsel %vm610, %v609, %v608
  %612 = vst [vmem:[%s2 + $0x6] sm:$0x1] %v611
  %v613 = vld [vmem:[#allocation3 + $0x28] sm:$0x1]
  %vm614 = vcmp.eq.f32.partialorder %v611, 0.0
  %v615 = vsel %vm614, %v613, 0.0
  %v616 = vld [vmem:[#allocation3 + $0x29] sm:$0x1]
  %vm617 = vcmp.eq.f32.partialorder %v611, 1.0
  %v618 = vsel %vm617, %v616, %v615
  %v619 = vld [vmem:[#allocation3 + $0x2a] sm:$0x1]
  %vm620 = vcmp.eq.f32.partialorder %v611, 2.0
  %v621 = vsel %vm620, %v619, %v618
  %v622 = vld [vmem:[#allocation3 + $0x2b] sm:$0x1]
  %vm623 = vcmp.eq.f32.partialorder %v611, 3.0
  %v624 = vsel %vm623, %v622, %v621
  %v625 = vld [vmem:[#allocation3 + $0x2c] sm:$0x1]
  %vm626 = vcmp.eq.f32.partialorder %v611, 4.0
  %v627 = vsel %vm626, %v625, %v624
  %v628 = vld [vmem:[#allocation3 + $0x2d] sm:$0x1]
  %vm629 = vcmp.eq.f32.partialorder %v611, 5.0
  %v630 = vsel %vm629, %v628, %v627
  %v631 = vld [vmem:[#allocation3 + $0x2e] sm:$0x1]
  %vm632 = vcmp.eq.f32.partialorder %v611, 6.0
  %v633 = vsel %vm632, %v631, %v630
  %v634 = vld [vmem:[#allocation3 + $0x2f] sm:$0x1]
  %vm635 = vcmp.eq.f32.partialorder %v611, 7.0
  %v636 = vsel %vm635, %v634, %v633
  %637 = vst [vmem:[%s2 + $0x5] sm:$0x1] %v636
  %v638 = vld [vmem:[#allocation3 + $0x20] sm:$0x1]
  %vm639 = vcmp.eq.f32.partialorder %v636, 0.0
  %v640 = vsel %vm639, %v638, 0.0
  %v641 = vld [vmem:[#allocation3 + $0x21] sm:$0x1]
  %vm642 = vcmp.eq.f32.partialorder %v636, 1.0
  %v643 = vsel %vm642, %v641, %v640
  %v644 = vld [vmem:[#allocation3 + $0x22] sm:$0x1]
  %vm645 = vcmp.eq.f32.partialorder %v636, 2.0
  %v646 = vsel %vm645, %v644, %v643
  %v647 = vld [vmem:[#allocation3 + $0x23] sm:$0x1]
  %vm648 = vcmp.eq.f32.partialorder %v636, 3.0
  %v649 = vsel %vm648, %v647, %v646
  %v650 = vld [vmem:[#allocation3 + $0x24] sm:$0x1]
  %vm651 = vcmp.eq.f32.partialorder %v636, 4.0
  %v652 = vsel %vm651, %v650, %v649
  %v653 = vld [vmem:[#allocation3 + $0x25] sm:$0x1]
  %vm654 = vcmp.eq.f32.partialorder %v636, 5.0
  %v655 = vsel %vm654, %v653, %v652
  %v656 = vld [vmem:[#allocation3 + $0x26] sm:$0x1]
  %vm657 = vcmp.eq.f32.partialorder %v636, 6.0
  %v658 = vsel %vm657, %v656, %v655
  %v659 = vld [vmem:[#allocation3 + $0x27] sm:$0x1]
  %vm660 = vcmp.eq.f32.partialorder %v636, 7.0
  %v661 = vsel %vm660, %v659, %v658
  %662 = vst [vmem:[%s2 + $0x4] sm:$0x1] %v661
  %v663 = vld [vmem:[#allocation3 + $0x18] sm:$0x1]
  %vm664 = vcmp.eq.f32.partialorder %v661, 0.0
  %v665 = vsel %vm664, %v663, 0.0
  %v666 = vld [vmem:[#allocation3 + $0x19] sm:$0x1]
  %vm667 = vcmp.eq.f32.partialorder %v661, 1.0
  %v668 = vsel %vm667, %v666, %v665
  %v669 = vld [vmem:[#allocation3 + $0x1a] sm:$0x1]
  %vm670 = vcmp.eq.f32.partialorder %v661, 2.0
  %v671 = vsel %vm670, %v669, %v668
  %v672 = vld [vmem:[#allocation3 + $0x1b] sm:$0x1]
  %vm673 = vcmp.eq.f32.partialorder %v661, 3.0
  %v674 = vsel %vm673, %v672, %v671
  %v675 = vld [vmem:[#allocation3 + $0x1c] sm:$0x1]
  %vm676 = vcmp.eq.f32.partialorder %v661, 4.0
  %v677 = vsel %vm676, %v675, %v674
  %v678 = vld [vmem:[#allocation3 + $0x1d] sm:$0x1]
  %vm679 = vcmp.eq.f32.partialorder %v661, 5.0
  %v680 = vsel %vm679, %v678, %v677
  %v681 = vld [vmem:[#allocation3 + $0x1e] sm:$0x1]
  %vm682 = vcmp.eq.f32.partialorder %v661, 6.0
  %v683 = vsel %vm682, %v681, %v680
  %v684 = vld [vmem:[#allocation3 + $0x1f] sm:$0x1]
  %vm685 = vcmp.eq.f32.partialorder %v661, 7.0
  %v686 = vsel %vm685, %v684, %v683
  %687 = vst [vmem:[%s2 + $0x3] sm:$0x1] %v686
  %v688 = vld [vmem:[#allocation3 + $0x10] sm:$0x1]
  %vm689 = vcmp.eq.f32.partialorder %v686, 0.0
  %v690 = vsel %vm689, %v688, 0.0
  %v691 = vld [vmem:[#allocation3 + $0x11] sm:$0x1]
  %vm692 = vcmp.eq.f32.partialorder %v686, 1.0
  %v693 = vsel %vm692, %v691, %v690
  %v694 = vld [vmem:[#allocation3 + $0x12] sm:$0x1]
  %vm695 = vcmp.eq.f32.partialorder %v686, 2.0
  %v696 = vsel %vm695, %v694, %v693
  %v697 = vld [vmem:[#allocation3 + $0x13] sm:$0x1]
  %vm698 = vcmp.eq.f32.partialorder %v686, 3.0
  %v699 = vsel %vm698, %v697, %v696
  %v700 = vld [vmem:[#allocation3 + $0x14] sm:$0x1]
  %vm701 = vcmp.eq.f32.partialorder %v686, 4.0
  %v702 = vsel %vm701, %v700, %v699
  %v703 = vld [vmem:[#allocation3 + $0x15] sm:$0x1]
  %vm704 = vcmp.eq.f32.partialorder %v686, 5.0
  %v705 = vsel %vm704, %v703, %v702
  %v706 = vld [vmem:[#allocation3 + $0x16] sm:$0x1]
  %vm707 = vcmp.eq.f32.partialorder %v686, 6.0
  %v708 = vsel %vm707, %v706, %v705
  %v709 = vld [vmem:[#allocation3 + $0x17] sm:$0x1]
  %vm710 = vcmp.eq.f32.partialorder %v686, 7.0
  %v711 = vsel %vm710, %v709, %v708
  %712 = vst [vmem:[%s2 + $0x2] sm:$0x1] %v711
  %v713 = vld [vmem:[#allocation3 + $0x8] sm:$0x1]
  %vm714 = vcmp.eq.f32.partialorder %v711, 0.0
  %v715 = vsel %vm714, %v713, 0.0
  %v716 = vld [vmem:[#allocation3 + $0x9] sm:$0x1]
  %vm717 = vcmp.eq.f32.partialorder %v711, 1.0
  %v718 = vsel %vm717, %v716, %v715
  %v719 = vld [vmem:[#allocation3 + $0xa] sm:$0x1]
  %vm720 = vcmp.eq.f32.partialorder %v711, 2.0
  %v721 = vsel %vm720, %v719, %v718
  %v722 = vld [vmem:[#allocation3 + $0xb] sm:$0x1]
  %vm723 = vcmp.eq.f32.partialorder %v711, 3.0
  %v724 = vsel %vm723, %v722, %v721
  %v725 = vld [vmem:[#allocation3 + $0xc] sm:$0x1]
  %vm726 = vcmp.eq.f32.partialorder %v711, 4.0
  %v727 = vsel %vm726, %v725, %v724
  %v728 = vld [vmem:[#allocation3 + $0xd] sm:$0x1]
  %vm729 = vcmp.eq.f32.partialorder %v711, 5.0
  %v730 = vsel %vm729, %v728, %v727
  %v731 = vld [vmem:[#allocation3 + $0xe] sm:$0x1]
  %vm732 = vcmp.eq.f32.partialorder %v711, 6.0
  %v733 = vsel %vm732, %v731, %v730
  %v734 = vld [vmem:[#allocation3 + $0xf] sm:$0x1]
  %vm735 = vcmp.eq.f32.partialorder %v711, 7.0
  %v736 = vsel %vm735, %v734, %v733
  %737 = vst [vmem:[%s2 + $0x1] sm:$0x1] %v736
  %v738 = vld [vmem:[#allocation3] sm:$0x1]
  %vm739 = vcmp.eq.f32.partialorder %v736, 0.0
  %v740 = vsel %vm739, %v738, 0.0
  %v741 = vld [vmem:[#allocation3 + $0x1] sm:$0x1]
  %vm742 = vcmp.eq.f32.partialorder %v736, 1.0
  %v743 = vsel %vm742, %v741, %v740
  %v744 = vld [vmem:[#allocation3 + $0x2] sm:$0x1]
  %vm745 = vcmp.eq.f32.partialorder %v736, 2.0
  %v746 = vsel %vm745, %v744, %v743
  %v747 = vld [vmem:[#allocation3 + $0x3] sm:$0x1]
  %vm748 = vcmp.eq.f32.partialorder %v736, 3.0
  %v749 = vsel %vm748, %v747, %v746
  %v750 = vld [vmem:[#allocation3 + $0x4] sm:$0x1]
  %vm751 = vcmp.eq.f32.partialorder %v736, 4.0
  %v752 = vsel %vm751, %v750, %v749
  %v753 = vld [vmem:[#allocation3 + $0x5] sm:$0x1]
  %vm754 = vcmp.eq.f32.partialorder %v736, 5.0
  %v755 = vsel %vm754, %v753, %v752
  %v756 = vld [vmem:[#allocation3 + $0x6] sm:$0x1]
  %vm757 = vcmp.eq.f32.partialorder %v736, 6.0
  %v758 = vsel %vm757, %v756, %v755
  %v759 = vld [vmem:[#allocation3 + $0x7] sm:$0x1]
  %vm760 = vcmp.eq.f32.partialorder %v736, 7.0
  %v761 = vsel %vm760, %v759, %v758
  %762 = vst [vmem:[%s2] sm:$0x1] %v761
  %763 = vst [vmem:[%s2 + $0x8] sm:$0x1] %v586
  // Predicated region
  $region10: #{viterbi_decode_batch.1} parent=0 // pred_check
    _
  $region11: #{viterbi_decode_batch.1} parent=0 // pred_check_branch
    %765 = sbr.rel (0) target = $region13
  $region12: #{viterbi_decode_batch.1} parent=0 // pred_region
    _
  $region13: #{viterbi_decode_batch.1} parent=0 // pred_fallthru
    _
  // Predicated region
  $region14: #{viterbi_decode_batch.1} parent=0 // pred_check
    _
  $region15: #{viterbi_decode_batch.1} parent=0 // pred_check_branch
    %767 = sbr.rel (0) target = $region17
  $region16: #{viterbi_decode_batch.1} parent=0 // pred_region
    _
  $region17: #{viterbi_decode_batch.1} parent=0 // pred_fallthru
    _

</llo_original>
